<compile_context>
chip_gen: v7x
topology: tpu7x:2x2x1
jax: 0.10.0
libtpu: 0.0.40
codegen_flags: <defaults>
</compile_context>

<pallas_src>
import math

import jax
import jax.numpy as jnp
from jax.experimental import pallas as pl
from jax.experimental.pallas import tpu as pltpu

# ---------------------------------------------------------------------------
# Model dimensions (from the PyTorch module)
# ---------------------------------------------------------------------------
SLICE_START = 1536
SLICE_END = 2560
IN_FEATURES = SLICE_END - SLICE_START   # 1024
HIDDEN = 512
OUT_FEATURES = 2                        # gaze (theta, phi)
OUT_PAD = 128                           # lane-dense padded output width

CHUNK = 512                             # blocked column-window width
_COL0 = SLICE_START // CHUNK            # column block 3 -> elements 1536:2048
assert SLICE_START % CHUNK == 0 and IN_FEATURES == 2 * CHUNK

MAX_TB = 1024                           # max batch-tile rows


def _cdiv(a, b):
    return -(-a // b)


def _round_up(n, m):
    return _cdiv(n, m) * m


def _batch_tiling(B):
    """Pick (tile_rows, grid_steps).

    tile_rows is a multiple of 8 (or == B for tiny B), as large as possible up
    to MAX_TB, with >=2 grid steps when feasible (so the v7x megacore's second
    TensorCore gets work) and minimal ragged-tile waste.  The ragged last
    batch block (B not a multiple of the tile) is handled by Pallas OOB
    clipping; garbage rows only affect output rows we never return.
    """
    if B <= 8:
        return B, 1                      # single full-extent block
    B8 = _round_up(B, 8)
    n_tiles = max(_cdiv(B8, MAX_TB), 2)
    tb = min(MAX_TB, _round_up(_cdiv(B8, n_tiles), 8))
    return tb, _cdiv(B, tb)


def _resident(shape):
    """Constant-index operand: DMA'd once, stays VMEM-resident; single buffer."""
    try:
        return pl.BlockSpec(shape, lambda i: (0, 0),
                            pipeline_mode=pl.Buffered(1))
    except (TypeError, AttributeError):   # fallback: default double-buffering
        return pl.BlockSpec(shape, lambda i: (0, 0))


# ---------------------------------------------------------------------------
# Pallas kernel: one batch tile of the 3-layer MLP head, fully in VMEM
# ---------------------------------------------------------------------------
def _gaze_fc_kernel(x_lo_ref, x_hi_ref, w1_ref, b1_ref, w2_ref, b2_ref,
                    w3_ref, b3_ref, o_ref):
    # In-kernel f32 -> bf16 cast (VPU, hidden under MXU work).
    x_lo = x_lo_ref[...].astype(jnp.bfloat16)       # (TB, 512): cols 1536:2048
    x_hi = x_hi_ref[...].astype(jnp.bfloat16)       # (TB, 512): cols 2048:2560

    # Layer 1 as two half-K matmuls (avoids a lane-dim concat of the chunks).
    h1 = jnp.dot(x_lo, w1_ref[0:CHUNK, :], preferred_element_type=jnp.float32)
    h1 = h1 + jnp.dot(x_hi, w1_ref[CHUNK:IN_FEATURES, :],
                      preferred_element_type=jnp.float32)
    h1 = jnp.maximum(h1 + b1_ref[...], 0.0).astype(jnp.bfloat16)

    h2 = jnp.dot(h1, w2_ref[...], preferred_element_type=jnp.float32)
    h2 = jnp.maximum(h2 + b2_ref[...], 0.0).astype(jnp.bfloat16)

    out = jnp.dot(h2, w3_ref[...], preferred_element_type=jnp.float32)
    o_ref[...] = (out + b3_ref[...]).astype(o_ref.dtype)     # (TB, 128) bf16


def gaze_estimation_latent_forward(latent, params):
    """latent: (B, C, H, W) or (B, F) array; params: dict from init_params."""
    B = latent.shape[0]
    x = latent.reshape(B, -1)           # row-major flatten (free bitcast)
    F = x.shape[1]
    assert F >= SLICE_END, (
        f"flattened latent has {F} features, need >= {SLICE_END}")

    TB, steps = _batch_tiling(B)

    w1, b1 = params["w1"], params["b1"]
    w2, b2 = params["w2"], params["b2"]
    w3, b3 = params["w3"], params["b3"]          # zero-padded to OUT_PAD lanes

    flops = 2 * B * (IN_FEATURES * HIDDEN + HIDDEN * HIDDEN + HIDDEN * OUT_PAD)
    bytes_accessed = (B * IN_FEATURES * x.dtype.itemsize
                      + sum(int(p.size) * p.dtype.itemsize
                            for p in (w1, b1, w2, b2, w3, b3))
                      + B * OUT_PAD * 2)

    # NOTE: for tiny-batch serving the one-time ~1.7 MiB weight DMA dominates;
    # amortize by batching requests or prefetching weights across calls (P10).
    out_padded = pl.pallas_call(
        _gaze_fc_kernel,
        out_shape=jax.ShapeDtypeStruct((B, OUT_PAD), jnp.bfloat16),
        grid_spec=pltpu.PrefetchScalarGridSpec(
            num_scalar_prefetch=0,
            grid=(steps,),
            in_specs=[
                # activation chunks: the same flattened latent fed twice, with
                # the 1536:2560 window expressed as column blocks 3 and 4.
                pl.BlockSpec((TB, CHUNK), lambda i: (i, _COL0)),
                pl.BlockSpec((TB, CHUNK), lambda i: (i, _COL0 + 1)),
                # weights / biases: constant block -> resident across steps
                _resident((IN_FEATURES, HIDDEN)),
                _resident((1, HIDDEN)),
                _resident((HIDDEN, HIDDEN)),
                _resident((1, HIDDEN)),
                _resident((HIDDEN, OUT_PAD)),
                _resident((1, OUT_PAD)),
            ],
            out_specs=pl.BlockSpec((TB, OUT_PAD), lambda i: (i, 0)),
        ),
        compiler_params=pltpu.CompilerParams(
            dimension_semantics=("parallel",),
            vmem_limit_bytes=32 * 1024 * 1024,
        ),
        cost_estimate=pl.CostEstimate(
            flops=flops, transcendentals=0, bytes_accessed=bytes_accessed),
    )(x, x, w1, b1, w2, b2, w3, b3)

    # strip the lane padding of the final layer; return f32 like the module
    return out_padded[:, :OUT_FEATURES].astype(jnp.float32)


# ---------------------------------------------------------------------------
# Deterministic parameter init matching the module's _init_weights:
# kaiming_uniform_(mode='fan_in', nonlinearity='relu'), zero biases.
# Weights stored as (in, out) bf16; the last layer is zero-padded 2 -> OUT_PAD.
# ---------------------------------------------------------------------------
def _kaiming_uniform(key, fan_in, fan_out):
    bound = math.sqrt(2.0) * math.sqrt(3.0 / fan_in)  # gain(relu)*sqrt(3/fan_in)
    return jax.random.uniform(key, (fan_in, fan_out), jnp.float32,
                              minval=-bound, maxval=bound)


def init_params(key):
    k1, k2, k3 = jax.random.split(key, 3)
    w1 = _kaiming_uniform(k1, IN_FEATURES, HIDDEN)
    w2 = _kaiming_uniform(k2, HIDDEN, HIDDEN)
    w3 = _kaiming_uniform(k3, HIDDEN, OUT_FEATURES)
    w3_pad = jnp.zeros((HIDDEN, OUT_PAD), jnp.float32).at[:, :OUT_FEATURES].set(w3)
    return {
        "w1": w1.astype(jnp.bfloat16),
        "b1": jnp.zeros((1, HIDDEN), jnp.float32),
        "w2": w2.astype(jnp.bfloat16),
        "b2": jnp.zeros((1, HIDDEN), jnp.float32),
        "w3": w3_pad.astype(jnp.bfloat16),
        "b3": jnp.zeros((1, OUT_PAD), jnp.float32),
    }


# ---------------------------------------------------------------------------
if __name__ == "__main__":
    key = jax.random.PRNGKey(0)
    k_params, k_input = jax.random.split(key)

    params = init_params(k_params)

    # small latent consistent with the forward: flattens to 4096 >= 2560 feats
    B, C, H, W = 2, 4, 32, 32
    latent = jax.random.normal(k_input, (B, C, H, W), jnp.float32)

    out = gaze_estimation_latent_forward(latent, params)
    out = jax.block_until_ready(out)

    # bf16-faithful pure-JAX reference of the same math (incl. bf16 output)
    x = latent.reshape(B, -1)[:, SLICE_START:SLICE_END].astype(jnp.bfloat16)
    h1 = jnp.maximum(
        jnp.dot(x, params["w1"], preferred_element_type=jnp.float32)
        + params["b1"], 0.0).astype(jnp.bfloat16)
    h2 = jnp.maximum(
        jnp.dot(h1, params["w2"], preferred_element_type=jnp.float32)
        + params["b2"], 0.0).astype(jnp.bfloat16)
    ref = (jnp.dot(h2, params["w3"], preferred_element_type=jnp.float32)
           + params["b3"])[:, :OUT_FEATURES]
    ref = ref.astype(jnp.bfloat16).astype(jnp.float32)

    assert out.shape == (B, OUT_FEATURES)
    assert out.dtype == jnp.float32
    assert jnp.allclose(out, ref, atol=5e-2, rtol=2e-2), (out, ref)

    print("KERNEL_OK")
</pallas_src>

<mosaic_0001>
module attributes {stable_mosaic.version = 11 : i64} {
  func.func @_gaze_fc_kernel(%arg0: i32, %arg1: memref<2x512xf32, #tpu.memory_space<vmem>>, %arg2: memref<2x512xf32, #tpu.memory_space<vmem>>, %arg3: memref<1024x512xbf16, #tpu.memory_space<vmem>>, %arg4: memref<1x512xf32, #tpu.memory_space<vmem>>, %arg5: memref<512x512xbf16, #tpu.memory_space<vmem>>, %arg6: memref<1x512xf32, #tpu.memory_space<vmem>>, %arg7: memref<512x128xbf16, #tpu.memory_space<vmem>>, %arg8: memref<1x128xf32, #tpu.memory_space<vmem>>, %arg9: memref<2x128xbf16, #tpu.memory_space<vmem>>) attributes {dimension_semantics = [#tpu.dimension_semantics<parallel>], iteration_bounds = array<i64: 1>, scalar_prefetch = 0 : i64, scratch_operands = 0 : i64, tpu.core_type = #tpu.core_type<tc>, window_params = [{transform_indices = @transform_0, window_bounds = array<i64: 2, 512>}, {transform_indices = @transform_1, window_bounds = array<i64: 2, 512>}, {pipeline_mode = #tpu.pipeline_mode<synchronous>, transform_indices = @transform_2, window_bounds = array<i64: 1024, 512>}, {pipeline_mode = #tpu.pipeline_mode<synchronous>, transform_indices = @transform_3, window_bounds = array<i64: 1, 512>}, {pipeline_mode = #tpu.pipeline_mode<synchronous>, transform_indices = @transform_4, window_bounds = array<i64: 512, 512>}, {pipeline_mode = #tpu.pipeline_mode<synchronous>, transform_indices = @transform_5, window_bounds = array<i64: 1, 512>}, {pipeline_mode = #tpu.pipeline_mode<synchronous>, transform_indices = @transform_6, window_bounds = array<i64: 512, 128>}, {pipeline_mode = #tpu.pipeline_mode<synchronous>, transform_indices = @transform_7, window_bounds = array<i64: 1, 128>}, {transform_indices = @transform_8, window_bounds = array<i64: 2, 128>}]} {
    %c0 = arith.constant 0 : index
    %c0_0 = arith.constant 0 : index
    %0 = vector.load %arg1[%c0, %c0_0] : memref<2x512xf32, #tpu.memory_space<vmem>>, vector<2x512xf32>
    %1 = arith.truncf %0 : vector<2x512xf32> to vector<2x512xbf16>
    %c0_1 = arith.constant 0 : index
    %c0_2 = arith.constant 0 : index
    %2 = vector.load %arg2[%c0_1, %c0_2] : memref<2x512xf32, #tpu.memory_space<vmem>>, vector<2x512xf32>
    %3 = arith.truncf %2 : vector<2x512xf32> to vector<2x512xbf16>
    %c0_3 = arith.constant 0 : index
    %c0_4 = arith.constant 0 : index
    %4 = vector.load %arg3[%c0_3, %c0_4] : memref<1024x512xbf16, #tpu.memory_space<vmem>>, vector<512x512xbf16>
    %cst = arith.constant dense<0.000000e+00> : vector<2x512xf32>
    %5 = tpu.matmul %1, %4, %cst {dimension_numbers = #tpu.dot_dimension_numbers<[1], [0], [0], [1], [0, 0, 1, 1], [], []>} : vector<2x512xbf16>, vector<512x512xbf16>, vector<2x512xf32> -> vector<2x512xf32>
    %c512 = arith.constant 512 : index
    %c0_5 = arith.constant 0 : index
    %6 = vector.load %arg3[%c512, %c0_5] : memref<1024x512xbf16, #tpu.memory_space<vmem>>, vector<512x512xbf16>
    %cst_6 = arith.constant dense<0.000000e+00> : vector<2x512xf32>
    %7 = tpu.matmul %3, %6, %cst_6 {dimension_numbers = #tpu.dot_dimension_numbers<[1], [0], [0], [1], [0, 0, 1, 1], [], []>} : vector<2x512xbf16>, vector<512x512xbf16>, vector<2x512xf32> -> vector<2x512xf32>
    %8 = arith.addf %5, %7 : vector<2x512xf32>
    %c0_7 = arith.constant 0 : index
    %c0_8 = arith.constant 0 : index
    %9 = vector.load %arg4[%c0_7, %c0_8] : memref<1x512xf32, #tpu.memory_space<vmem>>, vector<1x512xf32>
    %10 = vector.broadcast %9 : vector<1x512xf32> to vector<2x512xf32>
    %11 = arith.addf %8, %10 : vector<2x512xf32>
    %cst_9 = arith.constant 0.000000e+00 : f32
    %12 = vector.broadcast %cst_9 : f32 to vector<2x512xf32>
    %13 = arith.maximumf %11, %12 : vector<2x512xf32>
    %14 = arith.truncf %13 : vector<2x512xf32> to vector<2x512xbf16>
    %c0_10 = arith.constant 0 : index
    %c0_11 = arith.constant 0 : index
    %15 = vector.load %arg5[%c0_10, %c0_11] : memref<512x512xbf16, #tpu.memory_space<vmem>>, vector<512x512xbf16>
    %cst_12 = arith.constant dense<0.000000e+00> : vector<2x512xf32>
    %16 = tpu.matmul %14, %15, %cst_12 {dimension_numbers = #tpu.dot_dimension_numbers<[1], [0], [0], [1], [0, 0, 1, 1], [], []>} : vector<2x512xbf16>, vector<512x512xbf16>, vector<2x512xf32> -> vector<2x512xf32>
    %c0_13 = arith.constant 0 : index
    %c0_14 = arith.constant 0 : index
    %17 = vector.load %arg6[%c0_13, %c0_14] : memref<1x512xf32, #tpu.memory_space<vmem>>, vector<1x512xf32>
    %18 = vector.broadcast %17 : vector<1x512xf32> to vector<2x512xf32>
    %19 = arith.addf %16, %18 : vector<2x512xf32>
    %cst_15 = arith.constant 0.000000e+00 : f32
    %20 = vector.broadcast %cst_15 : f32 to vector<2x512xf32>
    %21 = arith.maximumf %19, %20 : vector<2x512xf32>
    %22 = arith.truncf %21 : vector<2x512xf32> to vector<2x512xbf16>
    %c0_16 = arith.constant 0 : index
    %c0_17 = arith.constant 0 : index
    %23 = vector.load %arg7[%c0_16, %c0_17] : memref<512x128xbf16, #tpu.memory_space<vmem>>, vector<512x128xbf16>
    %cst_18 = arith.constant dense<0.000000e+00> : vector<2x128xf32>
    %24 = tpu.matmul %22, %23, %cst_18 {dimension_numbers = #tpu.dot_dimension_numbers<[1], [0], [0], [1], [0, 0, 1, 1], [], []>} : vector<2x512xbf16>, vector<512x128xbf16>, vector<2x128xf32> -> vector<2x128xf32>
    %c0_19 = arith.constant 0 : index
    %c0_20 = arith.constant 0 : index
    %25 = vector.load %arg8[%c0_19, %c0_20] : memref<1x128xf32, #tpu.memory_space<vmem>>, vector<1x128xf32>
    %26 = vector.broadcast %25 : vector<1x128xf32> to vector<2x128xf32>
    %27 = arith.addf %24, %26 : vector<2x128xf32>
    %28 = arith.truncf %27 : vector<2x128xf32> to vector<2x128xbf16>
    %c0_21 = arith.constant 0 : index
    %c0_22 = arith.constant 0 : index
    %29 = vector.load %arg9[%c0_21, %c0_22] : memref<2x128xbf16, #tpu.memory_space<vmem>>, vector<2x128xbf16>
    tpu.vector_store %arg9[%c0_21, %c0_22], %28 {strides = array<i32>} : memref<2x128xbf16, #tpu.memory_space<vmem>>, vector<2x128xbf16>,
    return
  }
  func.func @transform_0(%arg0: i32) -> (i32, i32) {
    %c3_i32 = arith.constant 3 : i32
    %c0_i32 = arith.constant 0 : i32
    return %arg0, %c3_i32 : i32, i32
  }
  func.func @transform_1(%arg0: i32) -> (i32, i32) {
    %c4_i32 = arith.constant 4 : i32
    %c0_i32 = arith.constant 0 : i32
    return %arg0, %c4_i32 : i32, i32
  }
  func.func @transform_2(%arg0: i32) -> (i32, i32) {
    %c0_i32 = arith.constant 0 : i32
    %c0_i32_0 = arith.constant 0 : i32
    %c0_i32_1 = arith.constant 0 : i32
    return %c0_i32, %c0_i32_0 : i32, i32
  }
  func.func @transform_3(%arg0: i32) -> (i32, i32) {
    %c0_i32 = arith.constant 0 : i32
    %c0_i32_0 = arith.constant 0 : i32
    %c0_i32_1 = arith.constant 0 : i32
    return %c0_i32, %c0_i32_0 : i32, i32
  }
  func.func @transform_4(%arg0: i32) -> (i32, i32) {
    %c0_i32 = arith.constant 0 : i32
    %c0_i32_0 = arith.constant 0 : i32
    %c0_i32_1 = arith.constant 0 : i32
    return %c0_i32, %c0_i32_0 : i32, i32
  }
  func.func @transform_5(%arg0: i32) -> (i32, i32) {
    %c0_i32 = arith.constant 0 : i32
    %c0_i32_0 = arith.constant 0 : i32
    %c0_i32_1 = arith.constant 0 : i32
    return %c0_i32, %c0_i32_0 : i32, i32
  }
  func.func @transform_6(%arg0: i32) -> (i32, i32) {
    %c0_i32 = arith.constant 0 : i32
    %c0_i32_0 = arith.constant 0 : i32
    %c0_i32_1 = arith.constant 0 : i32
    return %c0_i32, %c0_i32_0 : i32, i32
  }
  func.func @transform_7(%arg0: i32) -> (i32, i32) {
    %c0_i32 = arith.constant 0 : i32
    %c0_i32_0 = arith.constant 0 : i32
    %c0_i32_1 = arith.constant 0 : i32
    return %c0_i32, %c0_i32_0 : i32, i32
  }
  func.func @transform_8(%arg0: i32) -> (i32, i32) {
    %c0_i32 = arith.constant 0 : i32
    %c0_i32_0 = arith.constant 0 : i32
    return %arg0, %c0_i32 : i32, i32
  }
}

</mosaic_0001>

<llo_original>
// kernel: tpu_custom_call.1
$region0: #{tpu_custom_call.1}
  #allocation0 [shape = 'u32[]', space=smem, size = 0x4, offset = 0x4, fixed_abs, tag = 'smem constant byte address 0x4 - core index']
  #allocation1 [shape = 'u32[144,128]{1,0:T(1,128)}', space=vmem, size = 0x12000, scoped, tag = 'internal scratch']
  %s0 = inlined_call_operand.hbm [shape: f32[2,4096], index: 0, kind: input, shape index: {}]
  %s1 = inlined_call_operand.hbm [shape: f32[2,4096], index: 1, kind: input, shape index: {}]
  %s2 = inlined_call_operand.hbm [shape: bf16[1024,512], index: 2, kind: input, shape index: {}]
  %s3 = inlined_call_operand.vmem [shape: f32[1,512], index: 3, kind: input, shape index: {}]
  %s4 = inlined_call_operand.hbm [shape: bf16[512,512], index: 4, kind: input, shape index: {}]
  %s5 = inlined_call_operand.vmem [shape: f32[1,512], index: 5, kind: input, shape index: {}]
  %s6 = inlined_call_operand.hbm [shape: bf16[512,128], index: 6, kind: input, shape index: {}]
  %s7 = inlined_call_operand.vmem [shape: f32[1,128], index: 7, kind: input, shape index: {}]
  %s8 = inlined_call_operand.hbm [shape: bf16[2,128], index: 8, kind: output, shape index: {}]
  %s9 = sld [smem:[#allocation0]]
  $region62: #{tpu_custom_call.1} parent=0
    _
  %s11 = ssub.s32 1, %s9
  %s12 = scalar_select 0, %s11, %s9
  $region1: #{tpu_custom_call.1} parent=0
    #allocation2 [shape = 'u8[4096]{0}', space=vmem, size = 0x1000, scoped, tag = 'input window, operand 0, single buffered']
    #allocation3 [shape = 's32[1]{0}', space=sflag, size = 0x4, scoped, tag = 'scoped memory for tpu_custom_call.1']
    #allocation4 [shape = 's32[1]{0}', space=sflag, size = 0x4, scoped, tag = 'scoped memory for tpu_custom_call.1']
    #allocation5 [shape = 'u8[4096]{0}', space=vmem, size = 0x1000, scoped, tag = 'input window, operand 1, single buffered']
    #allocation6 [shape = 's32[1]{0}', space=sflag, size = 0x4, scoped, tag = 'scoped memory for tpu_custom_call.1']
    #allocation7 [shape = 'u8[1048576]{0}', space=vmem, size = 0x100000, scoped, tag = 'input window, operand 2, single buffered']
    #allocation8 [shape = 'u8[524288]{0}', space=vmem, size = 0x80000, scoped, tag = 'input window, operand 4, single buffered']
    #allocation9 [shape = 's32[1]{0}', space=sflag, size = 0x4, scoped, tag = 'scoped memory for tpu_custom_call.1']
    #allocation10 [shape = 'u8[131072]{0}', space=vmem, size = 0x20000, scoped, tag = 'input window, operand 6, single buffered']
    #allocation11 [shape = 'u8[512]{0}', space=vmem, size = 0x400, scoped, tag = 'output window, operand 0, single buffered']
    %13 = vsyncpa [#allocation3], 0
    %14 = vsyncpa [#allocation6], 0
    %15 = vsyncpa [#allocation9], 0
    %16 = vsyncpa [#allocation4], 0
    // Predicated region
    $region2: #{tpu_custom_call.1} parent=1 // pred_check
      _
    $region3: #{tpu_custom_call.1} parent=1 // pred_check_branch
      %18 = sbr.rel (0) target = $region5
    $region4: #{tpu_custom_call.1} parent=1 // pred_region
      %s20 = ssub.s32 128, 128
      %21 = vsyncadd [#allocation3], %s20
      %s22 = scalar_lea.hbm %s0, 384
      %s24 = sshll.u32 [#allocation2], 4
      %s25 = int_to_ptr.vmem [resolvable:$true] %s24
      %27 = dma.hbm_to_vmem [thread:$0]  %s22, 128, %s25, [#allocation3]
    $region5: #{tpu_custom_call.1} parent=1 // pred_fallthru
      _
    // Predicated region
    $region6: #{tpu_custom_call.1} parent=1 // pred_check
      _
    $region7: #{tpu_custom_call.1} parent=1 // pred_check_branch
      %29 = sbr.rel (0) target = $region9
    $region8: #{tpu_custom_call.1} parent=1 // pred_region
      %s31 = ssub.s32 128, 128
      %32 = vsyncadd [#allocation6], %s31
      %s33 = scalar_lea.hbm %s1, 512
      %s35 = sshll.u32 [#allocation5], 4
      %s36 = int_to_ptr.vmem [resolvable:$true] %s35
      %38 = dma.hbm_to_vmem [thread:$0]  %s33, 128, %s36, [#allocation6]
    $region9: #{tpu_custom_call.1} parent=1 // pred_fallthru
      _
    // Predicated region
    $region10: #{tpu_custom_call.1} parent=1 // pred_check
      _
    $region11: #{tpu_custom_call.1} parent=1 // pred_check_branch
      %40 = sbr.rel (0) target = $region13
    $region12: #{tpu_custom_call.1} parent=1 // pred_region
      %s42 = ssub.s32 32768, 32768
      %43 = vsyncadd [#allocation6], %s42
      %s44 = sshll.u32 [#allocation7], 4
      %s45 = int_to_ptr.vmem [resolvable:$true] %s44
      %50 = dma.hbm_to_vmem [thread:$0]  %s2, 32768, %s45, [#allocation6], 256, 256, 16
    $region13: #{tpu_custom_call.1} parent=1 // pred_fallthru
      _
    // Predicated region
    $region14: #{tpu_custom_call.1} parent=1 // pred_check
      _
    $region15: #{tpu_custom_call.1} parent=1 // pred_check_branch
      %52 = sbr.rel (0) target = $region17
    $region16: #{tpu_custom_call.1} parent=1 // pred_region
      _
    $region17: #{tpu_custom_call.1} parent=1 // pred_fallthru
      _
    // Predicated region
    $region18: #{tpu_custom_call.1} parent=1 // pred_check
      _
    $region19: #{tpu_custom_call.1} parent=1 // pred_check_branch
      %54 = sbr.rel (0) target = $region21
    $region20: #{tpu_custom_call.1} parent=1 // pred_region
      %s56 = ssub.s32 16384, 16384
      %57 = vsyncadd [#allocation9], %s56
      %s58 = sshll.u32 [#allocation8], 4
      %s59 = int_to_ptr.vmem [resolvable:$true] %s58
      %64 = dma.hbm_to_vmem [thread:$0]  %s4, 16384, %s59, [#allocation9], 256, 256, 16
    $region21: #{tpu_custom_call.1} parent=1 // pred_fallthru
      _
    // Predicated region
    $region22: #{tpu_custom_call.1} parent=1 // pred_check
      _
    $region23: #{tpu_custom_call.1} parent=1 // pred_check_branch
      %66 = sbr.rel (0) target = $region25
    $region24: #{tpu_custom_call.1} parent=1 // pred_region
      _
    $region25: #{tpu_custom_call.1} parent=1 // pred_fallthru
      _
    // Predicated region
    $region26: #{tpu_custom_call.1} parent=1 // pred_check
      _
    $region27: #{tpu_custom_call.1} parent=1 // pred_check_branch
      %68 = sbr.rel (0) target = $region29
    $region28: #{tpu_custom_call.1} parent=1 // pred_region
      %s70 = ssub.s32 4096, 4096
      %71 = vsyncadd [#allocation9], %s70
      %s72 = sshll.u32 [#allocation10], 4
      %s73 = int_to_ptr.vmem [resolvable:$true] %s72
      %78 = dma.hbm_to_vmem [thread:$0]  %s6, 4096, %s73, [#allocation9], 64, 64, 4
    $region29: #{tpu_custom_call.1} parent=1 // pred_fallthru
      _
    // Predicated region
    $region30: #{tpu_custom_call.1} parent=1 // pred_check
      _
    $region31: #{tpu_custom_call.1} parent=1 // pred_check_branch
      %80 = sbr.rel (0) target = $region33
    $region32: #{tpu_custom_call.1} parent=1 // pred_region
      _
    $region33: #{tpu_custom_call.1} parent=1 // pred_fallthru
      _
    // Predicated region
    $region34: #{tpu_custom_call.1} parent=1 // pred_check
      _
    $region35: #{tpu_custom_call.1} parent=1 // pred_check_branch
      %82 = sbr.rel (0) target = $region37
    $region36: #{tpu_custom_call.1} parent=1 // pred_region
      %83 = dma.done [#allocation3], 128
    $region37: #{tpu_custom_call.1} parent=1 // pred_fallthru
      _
    // Predicated region
    $region38: #{tpu_custom_call.1} parent=1 // pred_check
      _
    $region39: #{tpu_custom_call.1} parent=1 // pred_check_branch
      %85 = sbr.rel (0) target = $region41
    $region40: #{tpu_custom_call.1} parent=1 // pred_region
      %86 = dma.done [#allocation6], 128
    $region41: #{tpu_custom_call.1} parent=1 // pred_fallthru
      _
    // Predicated region
    $region42: #{tpu_custom_call.1} parent=1 // pred_check
      _
    $region43: #{tpu_custom_call.1} parent=1 // pred_check_branch
      %88 = sbr.rel (0) target = $region45
    $region44: #{tpu_custom_call.1} parent=1 // pred_region
      %89 = dma.done [#allocation6], 32768
    $region45: #{tpu_custom_call.1} parent=1 // pred_fallthru
      _
    // Predicated region
    $region46: #{tpu_custom_call.1} parent=1 // pred_check
      _
    $region47: #{tpu_custom_call.1} parent=1 // pred_check_branch
      %91 = sbr.rel (0) target = $region49
    $region48: #{tpu_custom_call.1} parent=1 // pred_region
      %92 = dma.done [#allocation9], 16384
    $region49: #{tpu_custom_call.1} parent=1 // pred_fallthru
      _
    // Predicated region
    $region50: #{tpu_custom_call.1} parent=1 // pred_check
      _
    $region51: #{tpu_custom_call.1} parent=1 // pred_check_branch
      %94 = sbr.rel (0) target = $region53
    $region52: #{tpu_custom_call.1} parent=1 // pred_region
      %95 = dma.done [#allocation9], 4096
    $region53: #{tpu_custom_call.1} parent=1 // pred_fallthru
      _
    %v97 = vld [vmem:[#allocation2] sm:$0xff]
    %v99 = vcombine.high %v97, %v97
    %v101 = vunpack.c.l.s4 1983009808
    %v102 = vunpack.c.0.s8 %v101
    %v103 = vlaneseq
    %v104 = vshrl.u32 %v103, 7
    %v105 = vsub.s32 %v102, %v104
    %v106 = vrot.slane %v97, %v105
    %v108 = vunpack.c.l.s4 1983009808
    %v109 = vunpack.c.0.s8 %v108
    %v110 = vlaneseq
    %v111 = vshrl.u32 %v110, 7
    %v112 = vsub.s32 %v109, %v111
    %v113 = vrot.slane %v99, %v112
    %v114 = vcombine.high %v106, %v106
    %v115 = vcombine.high %v113, %v113
    %v120 = vpack.c.bf16 %v106, %v106
    %v121 = vpack.c.bf16 %v114, %v114
    %v122 = vpack.c.bf16 %v113, %v113
    %v123 = vpack.c.bf16 %v115, %v115
    %v124 = vld [vmem:[#allocation5] sm:$0xff]
    %v126 = vcombine.high %v124, %v124
    %v128 = vunpack.c.l.s4 1983009808
    %v129 = vunpack.c.0.s8 %v128
    %v130 = vlaneseq
    %v131 = vshrl.u32 %v130, 7
    %v132 = vsub.s32 %v129, %v131
    %v133 = vrot.slane %v124, %v132
    %v135 = vunpack.c.l.s4 1983009808
    %v136 = vunpack.c.0.s8 %v135
    %v137 = vlaneseq
    %v138 = vshrl.u32 %v137, 7
    %v139 = vsub.s32 %v136, %v138
    %v140 = vrot.slane %v126, %v139
    %v141 = vcombine.high %v133, %v133
    %v142 = vcombine.high %v140, %v140
    %v147 = vpack.c.bf16 %v133, %v133
    %v148 = vpack.c.bf16 %v141, %v141
    %v149 = vpack.c.bf16 %v140, %v140
    %v150 = vpack.c.bf16 %v142, %v142
    %v151 = vld [vmem:[#allocation7] sm:$0xff]
    %v152 = vld [vmem:[#allocation7 + $0x8] sm:$0xff]
    %v153 = vld [vmem:[#allocation7 + $0x10] sm:$0xff]
    %v154 = vld [vmem:[#allocation7 + $0x18] sm:$0xff]
    %v155 = vld [vmem:[#allocation7 + $0x20] sm:$0xff]
    %v156 = vld [vmem:[#allocation7 + $0x28] sm:$0xff]
    %v157 = vld [vmem:[#allocation7 + $0x30] sm:$0xff]
    %v158 = vld [vmem:[#allocation7 + $0x38] sm:$0xff]
    %v159 = vld [vmem:[#allocation7 + $0x40] sm:$0xff]
    %v160 = vld [vmem:[#allocation7 + $0x48] sm:$0xff]
    %v161 = vld [vmem:[#allocation7 + $0x50] sm:$0xff]
    %v162 = vld [vmem:[#allocation7 + $0x58] sm:$0xff]
    %v163 = vld [vmem:[#allocation7 + $0x60] sm:$0xff]
    %v164 = vld [vmem:[#allocation7 + $0x68] sm:$0xff]
    %v165 = vld [vmem:[#allocation7 + $0x70] sm:$0xff]
    %v166 = vld [vmem:[#allocation7 + $0x78] sm:$0xff]
    %v167 = vld [vmem:[#allocation7 + $0x80] sm:$0xff]
    %v168 = vld [vmem:[#allocation7 + $0x88] sm:$0xff]
    %v169 = vld [vmem:[#allocation7 + $0x90] sm:$0xff]
    %v170 = vld [vmem:[#allocation7 + $0x98] sm:$0xff]
    %v171 = vld [vmem:[#allocation7 + $0xa0] sm:$0xff]
    %v172 = vld [vmem:[#allocation7 + $0xa8] sm:$0xff]
    %v173 = vld [vmem:[#allocation7 + $0xb0] sm:$0xff]
    %v174 = vld [vmem:[#allocation7 + $0xb8] sm:$0xff]
    %v175 = vld [vmem:[#allocation7 + $0xc0] sm:$0xff]
    %v176 = vld [vmem:[#allocation7 + $0xc8] sm:$0xff]
    %v177 = vld [vmem:[#allocation7 + $0xd0] sm:$0xff]
    %v178 = vld [vmem:[#allocation7 + $0xd8] sm:$0xff]
    %v179 = vld [vmem:[#allocation7 + $0xe0] sm:$0xff]
    %v180 = vld [vmem:[#allocation7 + $0xe8] sm:$0xff]
    %v181 = vld [vmem:[#allocation7 + $0xf0] sm:$0xff]
    %v182 = vld [vmem:[#allocation7 + $0xf8] sm:$0xff]
    %v183 = vld [vmem:[#allocation7 + $0x100] sm:$0xff]
    %v184 = vld [vmem:[#allocation7 + $0x108] sm:$0xff]
    %v185 = vld [vmem:[#allocation7 + $0x110] sm:$0xff]
    %v186 = vld [vmem:[#allocation7 + $0x118] sm:$0xff]
    %v187 = vld [vmem:[#allocation7 + $0x120] sm:$0xff]
    %v188 = vld [vmem:[#allocation7 + $0x128] sm:$0xff]
    %v189 = vld [vmem:[#allocation7 + $0x130] sm:$0xff]
    %v190 = vld [vmem:[#allocation7 + $0x138] sm:$0xff]
    %v191 = vld [vmem:[#allocation7 + $0x140] sm:$0xff]
    %v192 = vld [vmem:[#allocation7 + $0x148] sm:$0xff]
    %v193 = vld [vmem:[#allocation7 + $0x150] sm:$0xff]
    %v194 = vld [vmem:[#allocation7 + $0x158] sm:$0xff]
    %v195 = vld [vmem:[#allocation7 + $0x160] sm:$0xff]
    %v196 = vld [vmem:[#allocation7 + $0x168] sm:$0xff]
    %v197 = vld [vmem:[#allocation7 + $0x170] sm:$0xff]
    %v198 = vld [vmem:[#allocation7 + $0x178] sm:$0xff]
    %v199 = vld [vmem:[#allocation7 + $0x180] sm:$0xff]
    %v200 = vld [vmem:[#allocation7 + $0x188] sm:$0xff]
    %v201 = vld [vmem:[#allocation7 + $0x190] sm:$0xff]
    %v202 = vld [vmem:[#allocation7 + $0x198] sm:$0xff]
    %v203 = vld [vmem:[#allocation7 + $0x1a0] sm:$0xff]
    %v204 = vld [vmem:[#allocation7 + $0x1a8] sm:$0xff]
    %v205 = vld [vmem:[#allocation7 + $0x1b0] sm:$0xff]
    %v206 = vld [vmem:[#allocation7 + $0x1b8] sm:$0xff]
    %v207 = vld [vmem:[#allocation7 + $0x1c0] sm:$0xff]
    %v208 = vld [vmem:[#allocation7 + $0x1c8] sm:$0xff]
    %v209 = vld [vmem:[#allocation7 + $0x1d0] sm:$0xff]
    %v210 = vld [vmem:[#allocation7 + $0x1d8] sm:$0xff]
    %v211 = vld [vmem:[#allocation7 + $0x1e0] sm:$0xff]
    %v212 = vld [vmem:[#allocation7 + $0x1e8] sm:$0xff]
    %v213 = vld [vmem:[#allocation7 + $0x1f0] sm:$0xff]
    %v214 = vld [vmem:[#allocation7 + $0x1f8] sm:$0xff]
    %v215 = vld [vmem:[#allocation7 + $0x200] sm:$0xff]
    %v216 = vld [vmem:[#allocation7 + $0x208] sm:$0xff]
    %v217 = vld [vmem:[#allocation7 + $0x210] sm:$0xff]
    %v218 = vld [vmem:[#allocation7 + $0x218] sm:$0xff]
    %v219 = vld [vmem:[#allocation7 + $0x220] sm:$0xff]
    %v220 = vld [vmem:[#allocation7 + $0x228] sm:$0xff]
    %v221 = vld [vmem:[#allocation7 + $0x230] sm:$0xff]
    %v222 = vld [vmem:[#allocation7 + $0x238] sm:$0xff]
    %v223 = vld [vmem:[#allocation7 + $0x240] sm:$0xff]
    %v224 = vld [vmem:[#allocation7 + $0x248] sm:$0xff]
    %v225 = vld [vmem:[#allocation7 + $0x250] sm:$0xff]
    %v226 = vld [vmem:[#allocation7 + $0x258] sm:$0xff]
    %v227 = vld [vmem:[#allocation7 + $0x260] sm:$0xff]
    %v228 = vld [vmem:[#allocation7 + $0x268] sm:$0xff]
    %v229 = vld [vmem:[#allocation7 + $0x270] sm:$0xff]
    %v230 = vld [vmem:[#allocation7 + $0x278] sm:$0xff]
    %v231 = vld [vmem:[#allocation7 + $0x280] sm:$0xff]
    %v232 = vld [vmem:[#allocation7 + $0x288] sm:$0xff]
    %v233 = vld [vmem:[#allocation7 + $0x290] sm:$0xff]
    %v234 = vld [vmem:[#allocation7 + $0x298] sm:$0xff]
    %v235 = vld [vmem:[#allocation7 + $0x2a0] sm:$0xff]
    %v236 = vld [vmem:[#allocation7 + $0x2a8] sm:$0xff]
    %v237 = vld [vmem:[#allocation7 + $0x2b0] sm:$0xff]
    %v238 = vld [vmem:[#allocation7 + $0x2b8] sm:$0xff]
    %v239 = vld [vmem:[#allocation7 + $0x2c0] sm:$0xff]
    %v240 = vld [vmem:[#allocation7 + $0x2c8] sm:$0xff]
    %v241 = vld [vmem:[#allocation7 + $0x2d0] sm:$0xff]
    %v242 = vld [vmem:[#allocation7 + $0x2d8] sm:$0xff]
    %v243 = vld [vmem:[#allocation7 + $0x2e0] sm:$0xff]
    %v244 = vld [vmem:[#allocation7 + $0x2e8] sm:$0xff]
    %v245 = vld [vmem:[#allocation7 + $0x2f0] sm:$0xff]
    %v246 = vld [vmem:[#allocation7 + $0x2f8] sm:$0xff]
    %v247 = vld [vmem:[#allocation7 + $0x300] sm:$0xff]
    %v248 = vld [vmem:[#allocation7 + $0x308] sm:$0xff]
    %v249 = vld [vmem:[#allocation7 + $0x310] sm:$0xff]
    %v250 = vld [vmem:[#allocation7 + $0x318] sm:$0xff]
    %v251 = vld [vmem:[#allocation7 + $0x320] sm:$0xff]
    %v252 = vld [vmem:[#allocation7 + $0x328] sm:$0xff]
    %v253 = vld [vmem:[#allocation7 + $0x330] sm:$0xff]
    %v254 = vld [vmem:[#allocation7 + $0x338] sm:$0xff]
    %v255 = vld [vmem:[#allocation7 + $0x340] sm:$0xff]
    %v256 = vld [vmem:[#allocation7 + $0x348] sm:$0xff]
    %v257 = vld [vmem:[#allocation7 + $0x350] sm:$0xff]
    %v258 = vld [vmem:[#allocation7 + $0x358] sm:$0xff]
    %v259 = vld [vmem:[#allocation7 + $0x360] sm:$0xff]
    %v260 = vld [vmem:[#allocation7 + $0x368] sm:$0xff]
    %v261 = vld [vmem:[#allocation7 + $0x370] sm:$0xff]
    %v262 = vld [vmem:[#allocation7 + $0x378] sm:$0xff]
    %v263 = vld [vmem:[#allocation7 + $0x380] sm:$0xff]
    %v264 = vld [vmem:[#allocation7 + $0x388] sm:$0xff]
    %v265 = vld [vmem:[#allocation7 + $0x390] sm:$0xff]
    %v266 = vld [vmem:[#allocation7 + $0x398] sm:$0xff]
    %v267 = vld [vmem:[#allocation7 + $0x3a0] sm:$0xff]
    %v268 = vld [vmem:[#allocation7 + $0x3a8] sm:$0xff]
    %v269 = vld [vmem:[#allocation7 + $0x3b0] sm:$0xff]
    %v270 = vld [vmem:[#allocation7 + $0x3b8] sm:$0xff]
    %v271 = vld [vmem:[#allocation7 + $0x3c0] sm:$0xff]
    %v272 = vld [vmem:[#allocation7 + $0x3c8] sm:$0xff]
    %v273 = vld [vmem:[#allocation7 + $0x3d0] sm:$0xff]
    %v274 = vld [vmem:[#allocation7 + $0x3d8] sm:$0xff]
    %v275 = vld [vmem:[#allocation7 + $0x3e0] sm:$0xff]
    %v276 = vld [vmem:[#allocation7 + $0x3e8] sm:$0xff]
    %v277 = vld [vmem:[#allocation7 + $0x3f0] sm:$0xff]
    %v278 = vld [vmem:[#allocation7 + $0x3f8] sm:$0xff]
    %v279 = vld [vmem:[#allocation7 + $0x400] sm:$0xff]
    %v280 = vld [vmem:[#allocation7 + $0x408] sm:$0xff]
    %v281 = vld [vmem:[#allocation7 + $0x410] sm:$0xff]
    %v282 = vld [vmem:[#allocation7 + $0x418] sm:$0xff]
    %v283 = vld [vmem:[#allocation7 + $0x420] sm:$0xff]
    %v284 = vld [vmem:[#allocation7 + $0x428] sm:$0xff]
    %v285 = vld [vmem:[#allocation7 + $0x430] sm:$0xff]
    %v286 = vld [vmem:[#allocation7 + $0x438] sm:$0xff]
    %v287 = vld [vmem:[#allocation7 + $0x440] sm:$0xff]
    %v288 = vld [vmem:[#allocation7 + $0x448] sm:$0xff]
    %v289 = vld [vmem:[#allocation7 + $0x450] sm:$0xff]
    %v290 = vld [vmem:[#allocation7 + $0x458] sm:$0xff]
    %v291 = vld [vmem:[#allocation7 + $0x460] sm:$0xff]
    %v292 = vld [vmem:[#allocation7 + $0x468] sm:$0xff]
    %v293 = vld [vmem:[#allocation7 + $0x470] sm:$0xff]
    %v294 = vld [vmem:[#allocation7 + $0x478] sm:$0xff]
    %v295 = vld [vmem:[#allocation7 + $0x480] sm:$0xff]
    %v296 = vld [vmem:[#allocation7 + $0x488] sm:$0xff]
    %v297 = vld [vmem:[#allocation7 + $0x490] sm:$0xff]
    %v298 = vld [vmem:[#allocation7 + $0x498] sm:$0xff]
    %v299 = vld [vmem:[#allocation7 + $0x4a0] sm:$0xff]
    %v300 = vld [vmem:[#allocation7 + $0x4a8] sm:$0xff]
    %v301 = vld [vmem:[#allocation7 + $0x4b0] sm:$0xff]
    %v302 = vld [vmem:[#allocation7 + $0x4b8] sm:$0xff]
    %v303 = vld [vmem:[#allocation7 + $0x4c0] sm:$0xff]
    %v304 = vld [vmem:[#allocation7 + $0x4c8] sm:$0xff]
    %v305 = vld [vmem:[#allocation7 + $0x4d0] sm:$0xff]
    %v306 = vld [vmem:[#allocation7 + $0x4d8] sm:$0xff]
    %v307 = vld [vmem:[#allocation7 + $0x4e0] sm:$0xff]
    %v308 = vld [vmem:[#allocation7 + $0x4e8] sm:$0xff]
    %v309 = vld [vmem:[#allocation7 + $0x4f0] sm:$0xff]
    %v310 = vld [vmem:[#allocation7 + $0x4f8] sm:$0xff]
    %v311 = vld [vmem:[#allocation7 + $0x500] sm:$0xff]
    %v312 = vld [vmem:[#allocation7 + $0x508] sm:$0xff]
    %v313 = vld [vmem:[#allocation7 + $0x510] sm:$0xff]
    %v314 = vld [vmem:[#allocation7 + $0x518] sm:$0xff]
    %v315 = vld [vmem:[#allocation7 + $0x520] sm:$0xff]
    %v316 = vld [vmem:[#allocation7 + $0x528] sm:$0xff]
    %v317 = vld [vmem:[#allocation7 + $0x530] sm:$0xff]
    %v318 = vld [vmem:[#allocation7 + $0x538] sm:$0xff]
    %v319 = vld [vmem:[#allocation7 + $0x540] sm:$0xff]
    %v320 = vld [vmem:[#allocation7 + $0x548] sm:$0xff]
    %v321 = vld [vmem:[#allocation7 + $0x550] sm:$0xff]
    %v322 = vld [vmem:[#allocation7 + $0x558] sm:$0xff]
    %v323 = vld [vmem:[#allocation7 + $0x560] sm:$0xff]
    %v324 = vld [vmem:[#allocation7 + $0x568] sm:$0xff]
    %v325 = vld [vmem:[#allocation7 + $0x570] sm:$0xff]
    %v326 = vld [vmem:[#allocation7 + $0x578] sm:$0xff]
    %v327 = vld [vmem:[#allocation7 + $0x580] sm:$0xff]
    %v328 = vld [vmem:[#allocation7 + $0x588] sm:$0xff]
    %v329 = vld [vmem:[#allocation7 + $0x590] sm:$0xff]
    %v330 = vld [vmem:[#allocation7 + $0x598] sm:$0xff]
    %v331 = vld [vmem:[#allocation7 + $0x5a0] sm:$0xff]
    %v332 = vld [vmem:[#allocation7 + $0x5a8] sm:$0xff]
    %v333 = vld [vmem:[#allocation7 + $0x5b0] sm:$0xff]
    %v334 = vld [vmem:[#allocation7 + $0x5b8] sm:$0xff]
    %v335 = vld [vmem:[#allocation7 + $0x5c0] sm:$0xff]
    %v336 = vld [vmem:[#allocation7 + $0x5c8] sm:$0xff]
    %v337 = vld [vmem:[#allocation7 + $0x5d0] sm:$0xff]
    %v338 = vld [vmem:[#allocation7 + $0x5d8] sm:$0xff]
    %v339 = vld [vmem:[#allocation7 + $0x5e0] sm:$0xff]
    %v340 = vld [vmem:[#allocation7 + $0x5e8] sm:$0xff]
    %v341 = vld [vmem:[#allocation7 + $0x5f0] sm:$0xff]
    %v342 = vld [vmem:[#allocation7 + $0x5f8] sm:$0xff]
    %v343 = vld [vmem:[#allocation7 + $0x600] sm:$0xff]
    %v344 = vld [vmem:[#allocation7 + $0x608] sm:$0xff]
    %v345 = vld [vmem:[#allocation7 + $0x610] sm:$0xff]
    %v346 = vld [vmem:[#allocation7 + $0x618] sm:$0xff]
    %v347 = vld [vmem:[#allocation7 + $0x620] sm:$0xff]
    %v348 = vld [vmem:[#allocation7 + $0x628] sm:$0xff]
    %v349 = vld [vmem:[#allocation7 + $0x630] sm:$0xff]
    %v350 = vld [vmem:[#allocation7 + $0x638] sm:$0xff]
    %v351 = vld [vmem:[#allocation7 + $0x640] sm:$0xff]
    %v352 = vld [vmem:[#allocation7 + $0x648] sm:$0xff]
    %v353 = vld [vmem:[#allocation7 + $0x650] sm:$0xff]
    %v354 = vld [vmem:[#allocation7 + $0x658] sm:$0xff]
    %v355 = vld [vmem:[#allocation7 + $0x660] sm:$0xff]
    %v356 = vld [vmem:[#allocation7 + $0x668] sm:$0xff]
    %v357 = vld [vmem:[#allocation7 + $0x670] sm:$0xff]
    %v358 = vld [vmem:[#allocation7 + $0x678] sm:$0xff]
    %v359 = vld [vmem:[#allocation7 + $0x680] sm:$0xff]
    %v360 = vld [vmem:[#allocation7 + $0x688] sm:$0xff]
    %v361 = vld [vmem:[#allocation7 + $0x690] sm:$0xff]
    %v362 = vld [vmem:[#allocation7 + $0x698] sm:$0xff]
    %v363 = vld [vmem:[#allocation7 + $0x6a0] sm:$0xff]
    %v364 = vld [vmem:[#allocation7 + $0x6a8] sm:$0xff]
    %v365 = vld [vmem:[#allocation7 + $0x6b0] sm:$0xff]
    %v366 = vld [vmem:[#allocation7 + $0x6b8] sm:$0xff]
    %v367 = vld [vmem:[#allocation7 + $0x6c0] sm:$0xff]
    %v368 = vld [vmem:[#allocation7 + $0x6c8] sm:$0xff]
    %v369 = vld [vmem:[#allocation7 + $0x6d0] sm:$0xff]
    %v370 = vld [vmem:[#allocation7 + $0x6d8] sm:$0xff]
    %v371 = vld [vmem:[#allocation7 + $0x6e0] sm:$0xff]
    %v372 = vld [vmem:[#allocation7 + $0x6e8] sm:$0xff]
    %v373 = vld [vmem:[#allocation7 + $0x6f0] sm:$0xff]
    %v374 = vld [vmem:[#allocation7 + $0x6f8] sm:$0xff]
    %v375 = vld [vmem:[#allocation7 + $0x700] sm:$0xff]
    %v376 = vld [vmem:[#allocation7 + $0x708] sm:$0xff]
    %v377 = vld [vmem:[#allocation7 + $0x710] sm:$0xff]
    %v378 = vld [vmem:[#allocation7 + $0x718] sm:$0xff]
    %v379 = vld [vmem:[#allocation7 + $0x720] sm:$0xff]
    %v380 = vld [vmem:[#allocation7 + $0x728] sm:$0xff]
    %v381 = vld [vmem:[#allocation7 + $0x730] sm:$0xff]
    %v382 = vld [vmem:[#allocation7 + $0x738] sm:$0xff]
    %v383 = vld [vmem:[#allocation7 + $0x740] sm:$0xff]
    %v384 = vld [vmem:[#allocation7 + $0x748] sm:$0xff]
    %v385 = vld [vmem:[#allocation7 + $0x750] sm:$0xff]
    %v386 = vld [vmem:[#allocation7 + $0x758] sm:$0xff]
    %v387 = vld [vmem:[#allocation7 + $0x760] sm:$0xff]
    %v388 = vld [vmem:[#allocation7 + $0x768] sm:$0xff]
    %v389 = vld [vmem:[#allocation7 + $0x770] sm:$0xff]
    %v390 = vld [vmem:[#allocation7 + $0x778] sm:$0xff]
    %v391 = vld [vmem:[#allocation7 + $0x780] sm:$0xff]
    %v392 = vld [vmem:[#allocation7 + $0x788] sm:$0xff]
    %v393 = vld [vmem:[#allocation7 + $0x790] sm:$0xff]
    %v394 = vld [vmem:[#allocation7 + $0x798] sm:$0xff]
    %v395 = vld [vmem:[#allocation7 + $0x7a0] sm:$0xff]
    %v396 = vld [vmem:[#allocation7 + $0x7a8] sm:$0xff]
    %v397 = vld [vmem:[#allocation7 + $0x7b0] sm:$0xff]
    %v398 = vld [vmem:[#allocation7 + $0x7b8] sm:$0xff]
    %v399 = vld [vmem:[#allocation7 + $0x7c0] sm:$0xff]
    %v400 = vld [vmem:[#allocation7 + $0x7c8] sm:$0xff]
    %v401 = vld [vmem:[#allocation7 + $0x7d0] sm:$0xff]
    %v402 = vld [vmem:[#allocation7 + $0x7d8] sm:$0xff]
    %v403 = vld [vmem:[#allocation7 + $0x7e0] sm:$0xff]
    %v404 = vld [vmem:[#allocation7 + $0x7e8] sm:$0xff]
    %v405 = vld [vmem:[#allocation7 + $0x7f0] sm:$0xff]
    %v406 = vld [vmem:[#allocation7 + $0x7f8] sm:$0xff]
    %v535 = vunpack.c.l.b16 %v279
    %v536 = vunpack.c.h.b16 %v279
    %v537 = vunpack.c.l.b16 %v280
    %v538 = vunpack.c.h.b16 %v280
    %v539 = vunpack.c.l.b16 %v281
    %v540 = vunpack.c.h.b16 %v281
    %v541 = vunpack.c.l.b16 %v282
    %v542 = vunpack.c.h.b16 %v282
    %v543 = vunpack.c.l.b16 %v283
    %v544 = vunpack.c.h.b16 %v283
    %v545 = vunpack.c.l.b16 %v284
    %v546 = vunpack.c.h.b16 %v284
    %v547 = vunpack.c.l.b16 %v285
    %v548 = vunpack.c.h.b16 %v285
    %v549 = vunpack.c.l.b16 %v286
    %v550 = vunpack.c.h.b16 %v286
    %v551 = vunpack.c.l.b16 %v287
    %v552 = vunpack.c.h.b16 %v287
    %v553 = vunpack.c.l.b16 %v288
    %v554 = vunpack.c.h.b16 %v288
    %v555 = vunpack.c.l.b16 %v289
    %v556 = vunpack.c.h.b16 %v289
    %v557 = vunpack.c.l.b16 %v290
    %v558 = vunpack.c.h.b16 %v290
    %v559 = vunpack.c.l.b16 %v291
    %v560 = vunpack.c.h.b16 %v291
    %v561 = vunpack.c.l.b16 %v292
    %v562 = vunpack.c.h.b16 %v292
    %v563 = vunpack.c.l.b16 %v293
    %v564 = vunpack.c.h.b16 %v293
    %v565 = vunpack.c.l.b16 %v294
    %v566 = vunpack.c.h.b16 %v294
    %v567 = vunpack.c.l.b16 %v295
    %v568 = vunpack.c.h.b16 %v295
    %v569 = vunpack.c.l.b16 %v296
    %v570 = vunpack.c.h.b16 %v296
    %v571 = vunpack.c.l.b16 %v297
    %v572 = vunpack.c.h.b16 %v297
    %v573 = vunpack.c.l.b16 %v298
    %v574 = vunpack.c.h.b16 %v298
    %v575 = vunpack.c.l.b16 %v299
    %v576 = vunpack.c.h.b16 %v299
    %v577 = vunpack.c.l.b16 %v300
    %v578 = vunpack.c.h.b16 %v300
    %v579 = vunpack.c.l.b16 %v301
    %v580 = vunpack.c.h.b16 %v301
    %v581 = vunpack.c.l.b16 %v302
    %v582 = vunpack.c.h.b16 %v302
    %v583 = vunpack.c.l.b16 %v303
    %v584 = vunpack.c.h.b16 %v303
    %v585 = vunpack.c.l.b16 %v304
    %v586 = vunpack.c.h.b16 %v304
    %v587 = vunpack.c.l.b16 %v305
    %v588 = vunpack.c.h.b16 %v305
    %v589 = vunpack.c.l.b16 %v306
    %v590 = vunpack.c.h.b16 %v306
    %v591 = vunpack.c.l.b16 %v307
    %v592 = vunpack.c.h.b16 %v307
    %v593 = vunpack.c.l.b16 %v308
    %v594 = vunpack.c.h.b16 %v308
    %v595 = vunpack.c.l.b16 %v309
    %v596 = vunpack.c.h.b16 %v309
    %v597 = vunpack.c.l.b16 %v310
    %v598 = vunpack.c.h.b16 %v310
    %v599 = vunpack.c.l.b16 %v311
    %v600 = vunpack.c.h.b16 %v311
    %v601 = vunpack.c.l.b16 %v312
    %v602 = vunpack.c.h.b16 %v312
    %v603 = vunpack.c.l.b16 %v313
    %v604 = vunpack.c.h.b16 %v313
    %v605 = vunpack.c.l.b16 %v314
    %v606 = vunpack.c.h.b16 %v314
    %v607 = vunpack.c.l.b16 %v315
    %v608 = vunpack.c.h.b16 %v315
    %v609 = vunpack.c.l.b16 %v316
    %v610 = vunpack.c.h.b16 %v316
    %v611 = vunpack.c.l.b16 %v317
    %v612 = vunpack.c.h.b16 %v317
    %v613 = vunpack.c.l.b16 %v318
    %v614 = vunpack.c.h.b16 %v318
    %v615 = vunpack.c.l.b16 %v319
    %v616 = vunpack.c.h.b16 %v319
    %v617 = vunpack.c.l.b16 %v320
    %v618 = vunpack.c.h.b16 %v320
    %v619 = vunpack.c.l.b16 %v321
    %v620 = vunpack.c.h.b16 %v321
    %v621 = vunpack.c.l.b16 %v322
    %v622 = vunpack.c.h.b16 %v322
    %v623 = vunpack.c.l.b16 %v323
    %v624 = vunpack.c.h.b16 %v323
    %v625 = vunpack.c.l.b16 %v324
    %v626 = vunpack.c.h.b16 %v324
    %v627 = vunpack.c.l.b16 %v325
    %v628 = vunpack.c.h.b16 %v325
    %v629 = vunpack.c.l.b16 %v326
    %v630 = vunpack.c.h.b16 %v326
    %v631 = vunpack.c.l.b16 %v327
    %v632 = vunpack.c.h.b16 %v327
    %v633 = vunpack.c.l.b16 %v328
    %v634 = vunpack.c.h.b16 %v328
    %v635 = vunpack.c.l.b16 %v329
    %v636 = vunpack.c.h.b16 %v329
    %v637 = vunpack.c.l.b16 %v330
    %v638 = vunpack.c.h.b16 %v330
    %v639 = vunpack.c.l.b16 %v331
    %v640 = vunpack.c.h.b16 %v331
    %v641 = vunpack.c.l.b16 %v332
    %v642 = vunpack.c.h.b16 %v332
    %v643 = vunpack.c.l.b16 %v333
    %v644 = vunpack.c.h.b16 %v333
    %v645 = vunpack.c.l.b16 %v334
    %v646 = vunpack.c.h.b16 %v334
    %v647 = vunpack.c.l.b16 %v335
    %v648 = vunpack.c.h.b16 %v335
    %v649 = vunpack.c.l.b16 %v336
    %v650 = vunpack.c.h.b16 %v336
    %v651 = vunpack.c.l.b16 %v337
    %v652 = vunpack.c.h.b16 %v337
    %v653 = vunpack.c.l.b16 %v338
    %v654 = vunpack.c.h.b16 %v338
    %v655 = vunpack.c.l.b16 %v339
    %v656 = vunpack.c.h.b16 %v339
    %v657 = vunpack.c.l.b16 %v340
    %v658 = vunpack.c.h.b16 %v340
    %v659 = vunpack.c.l.b16 %v341
    %v660 = vunpack.c.h.b16 %v341
    %v661 = vunpack.c.l.b16 %v342
    %v662 = vunpack.c.h.b16 %v342
    %v663 = vunpack.c.l.b16 %v343
    %v664 = vunpack.c.h.b16 %v343
    %v665 = vunpack.c.l.b16 %v344
    %v666 = vunpack.c.h.b16 %v344
    %v667 = vunpack.c.l.b16 %v345
    %v668 = vunpack.c.h.b16 %v345
    %v669 = vunpack.c.l.b16 %v346
    %v670 = vunpack.c.h.b16 %v346
    %v671 = vunpack.c.l.b16 %v347
    %v672 = vunpack.c.h.b16 %v347
    %v673 = vunpack.c.l.b16 %v348
    %v674 = vunpack.c.h.b16 %v348
    %v675 = vunpack.c.l.b16 %v349
    %v676 = vunpack.c.h.b16 %v349
    %v677 = vunpack.c.l.b16 %v350
    %v678 = vunpack.c.h.b16 %v350
    %v679 = vunpack.c.l.b16 %v351
    %v680 = vunpack.c.h.b16 %v351
    %v681 = vunpack.c.l.b16 %v352
    %v682 = vunpack.c.h.b16 %v352
    %v683 = vunpack.c.l.b16 %v353
    %v684 = vunpack.c.h.b16 %v353
    %v685 = vunpack.c.l.b16 %v354
    %v686 = vunpack.c.h.b16 %v354
    %v687 = vunpack.c.l.b16 %v355
    %v688 = vunpack.c.h.b16 %v355
    %v689 = vunpack.c.l.b16 %v356
    %v690 = vunpack.c.h.b16 %v356
    %v691 = vunpack.c.l.b16 %v357
    %v692 = vunpack.c.h.b16 %v357
    %v693 = vunpack.c.l.b16 %v358
    %v694 = vunpack.c.h.b16 %v358
    %v695 = vunpack.c.l.b16 %v359
    %v696 = vunpack.c.h.b16 %v359
    %v697 = vunpack.c.l.b16 %v360
    %v698 = vunpack.c.h.b16 %v360
    %v699 = vunpack.c.l.b16 %v361
    %v700 = vunpack.c.h.b16 %v361
    %v701 = vunpack.c.l.b16 %v362
    %v702 = vunpack.c.h.b16 %v362
    %v703 = vunpack.c.l.b16 %v363
    %v704 = vunpack.c.h.b16 %v363
    %v705 = vunpack.c.l.b16 %v364
    %v706 = vunpack.c.h.b16 %v364
    %v707 = vunpack.c.l.b16 %v365
    %v708 = vunpack.c.h.b16 %v365
    %v709 = vunpack.c.l.b16 %v366
    %v710 = vunpack.c.h.b16 %v366
    %v711 = vunpack.c.l.b16 %v367
    %v712 = vunpack.c.h.b16 %v367
    %v713 = vunpack.c.l.b16 %v368
    %v714 = vunpack.c.h.b16 %v368
    %v715 = vunpack.c.l.b16 %v369
    %v716 = vunpack.c.h.b16 %v369
    %v717 = vunpack.c.l.b16 %v370
    %v718 = vunpack.c.h.b16 %v370
    %v719 = vunpack.c.l.b16 %v371
    %v720 = vunpack.c.h.b16 %v371
    %v721 = vunpack.c.l.b16 %v372
    %v722 = vunpack.c.h.b16 %v372
    %v723 = vunpack.c.l.b16 %v373
    %v724 = vunpack.c.h.b16 %v373
    %v725 = vunpack.c.l.b16 %v374
    %v726 = vunpack.c.h.b16 %v374
    %v727 = vunpack.c.l.b16 %v375
    %v728 = vunpack.c.h.b16 %v375
    %v729 = vunpack.c.l.b16 %v376
    %v730 = vunpack.c.h.b16 %v376
    %v731 = vunpack.c.l.b16 %v377
    %v732 = vunpack.c.h.b16 %v377
    %v733 = vunpack.c.l.b16 %v378
    %v734 = vunpack.c.h.b16 %v378
    %v735 = vunpack.c.l.b16 %v379
    %v736 = vunpack.c.h.b16 %v379
    %v737 = vunpack.c.l.b16 %v380
    %v738 = vunpack.c.h.b16 %v380
    %v739 = vunpack.c.l.b16 %v381
    %v740 = vunpack.c.h.b16 %v381
    %v741 = vunpack.c.l.b16 %v382
    %v742 = vunpack.c.h.b16 %v382
    %v743 = vunpack.c.l.b16 %v383
    %v744 = vunpack.c.h.b16 %v383
    %v745 = vunpack.c.l.b16 %v384
    %v746 = vunpack.c.h.b16 %v384
    %v747 = vunpack.c.l.b16 %v385
    %v748 = vunpack.c.h.b16 %v385
    %v749 = vunpack.c.l.b16 %v386
    %v750 = vunpack.c.h.b16 %v386
    %v751 = vunpack.c.l.b16 %v387
    %v752 = vunpack.c.h.b16 %v387
    %v753 = vunpack.c.l.b16 %v388
    %v754 = vunpack.c.h.b16 %v388
    %v755 = vunpack.c.l.b16 %v389
    %v756 = vunpack.c.h.b16 %v389
    %v757 = vunpack.c.l.b16 %v390
    %v758 = vunpack.c.h.b16 %v390
    %v759 = vunpack.c.l.b16 %v391
    %v760 = vunpack.c.h.b16 %v391
    %v761 = vunpack.c.l.b16 %v392
    %v762 = vunpack.c.h.b16 %v392
    %v763 = vunpack.c.l.b16 %v393
    %v764 = vunpack.c.h.b16 %v393
    %v765 = vunpack.c.l.b16 %v394
    %v766 = vunpack.c.h.b16 %v394
    %v767 = vunpack.c.l.b16 %v395
    %v768 = vunpack.c.h.b16 %v395
    %v769 = vunpack.c.l.b16 %v396
    %v770 = vunpack.c.h.b16 %v396
    %v771 = vunpack.c.l.b16 %v397
    %v772 = vunpack.c.h.b16 %v397
    %v773 = vunpack.c.l.b16 %v398
    %v774 = vunpack.c.h.b16 %v398
    %v775 = vunpack.c.l.b16 %v399
    %v776 = vunpack.c.h.b16 %v399
    %v777 = vunpack.c.l.b16 %v400
    %v778 = vunpack.c.h.b16 %v400
    %v779 = vunpack.c.l.b16 %v401
    %v780 = vunpack.c.h.b16 %v401
    %v781 = vunpack.c.l.b16 %v402
    %v782 = vunpack.c.h.b16 %v402
    %v783 = vunpack.c.l.b16 %v403
    %v784 = vunpack.c.h.b16 %v403
    %v785 = vunpack.c.l.b16 %v404
    %v786 = vunpack.c.h.b16 %v404
    %v787 = vunpack.c.l.b16 %v405
    %v788 = vunpack.c.h.b16 %v405
    %v789 = vunpack.c.l.b16 %v406
    %v790 = vunpack.c.h.b16 %v406
    %v791 = vpack.c.b16 %v539, %v535
    %v792 = vpack.c.b16 %v540, %v536
    %v793 = vpack.c.b16 %v541, %v537
    %v794 = vpack.c.b16 %v542, %v538
    %v795 = vpack.c.b16 %v547, %v543
    %v796 = vpack.c.b16 %v548, %v544
    %v797 = vpack.c.b16 %v549, %v545
    %v798 = vpack.c.b16 %v550, %v546
    %v799 = vpack.c.b16 %v555, %v551
    %v800 = vpack.c.b16 %v556, %v552
    %v801 = vpack.c.b16 %v557, %v553
    %v802 = vpack.c.b16 %v558, %v554
    %v803 = vpack.c.b16 %v563, %v559
    %v804 = vpack.c.b16 %v564, %v560
    %v805 = vpack.c.b16 %v565, %v561
    %v806 = vpack.c.b16 %v566, %v562
    %v807 = vpack.c.b16 %v571, %v567
    %v808 = vpack.c.b16 %v572, %v568
    %v809 = vpack.c.b16 %v573, %v569
    %v810 = vpack.c.b16 %v574, %v570
    %v811 = vpack.c.b16 %v579, %v575
    %v812 = vpack.c.b16 %v580, %v576
    %v813 = vpack.c.b16 %v581, %v577
    %v814 = vpack.c.b16 %v582, %v578
    %v815 = vpack.c.b16 %v587, %v583
    %v816 = vpack.c.b16 %v588, %v584
    %v817 = vpack.c.b16 %v589, %v585
    %v818 = vpack.c.b16 %v590, %v586
    %v819 = vpack.c.b16 %v595, %v591
    %v820 = vpack.c.b16 %v596, %v592
    %v821 = vpack.c.b16 %v597, %v593
    %v822 = vpack.c.b16 %v598, %v594
    %v823 = vpack.c.b16 %v603, %v599
    %v824 = vpack.c.b16 %v604, %v600
    %v825 = vpack.c.b16 %v605, %v601
    %v826 = vpack.c.b16 %v606, %v602
    %v827 = vpack.c.b16 %v611, %v607
    %v828 = vpack.c.b16 %v612, %v608
    %v829 = vpack.c.b16 %v613, %v609
    %v830 = vpack.c.b16 %v614, %v610
    %v831 = vpack.c.b16 %v619, %v615
    %v832 = vpack.c.b16 %v620, %v616
    %v833 = vpack.c.b16 %v621, %v617
    %v834 = vpack.c.b16 %v622, %v618
    %v835 = vpack.c.b16 %v627, %v623
    %v836 = vpack.c.b16 %v628, %v624
    %v837 = vpack.c.b16 %v629, %v625
    %v838 = vpack.c.b16 %v630, %v626
    %v839 = vpack.c.b16 %v635, %v631
    %v840 = vpack.c.b16 %v636, %v632
    %v841 = vpack.c.b16 %v637, %v633
    %v842 = vpack.c.b16 %v638, %v634
    %v843 = vpack.c.b16 %v643, %v639
    %v844 = vpack.c.b16 %v644, %v640
    %v845 = vpack.c.b16 %v645, %v641
    %v846 = vpack.c.b16 %v646, %v642
    %v847 = vpack.c.b16 %v651, %v647
    %v848 = vpack.c.b16 %v652, %v648
    %v849 = vpack.c.b16 %v653, %v649
    %v850 = vpack.c.b16 %v654, %v650
    %v851 = vpack.c.b16 %v659, %v655
    %v852 = vpack.c.b16 %v660, %v656
    %v853 = vpack.c.b16 %v661, %v657
    %v854 = vpack.c.b16 %v662, %v658
    %v855 = vpack.c.b16 %v667, %v663
    %v856 = vpack.c.b16 %v668, %v664
    %v857 = vpack.c.b16 %v669, %v665
    %v858 = vpack.c.b16 %v670, %v666
    %v859 = vpack.c.b16 %v675, %v671
    %v860 = vpack.c.b16 %v676, %v672
    %v861 = vpack.c.b16 %v677, %v673
    %v862 = vpack.c.b16 %v678, %v674
    %v863 = vpack.c.b16 %v683, %v679
    %v864 = vpack.c.b16 %v684, %v680
    %v865 = vpack.c.b16 %v685, %v681
    %v866 = vpack.c.b16 %v686, %v682
    %v867 = vpack.c.b16 %v691, %v687
    %v868 = vpack.c.b16 %v692, %v688
    %v869 = vpack.c.b16 %v693, %v689
    %v870 = vpack.c.b16 %v694, %v690
    %v871 = vpack.c.b16 %v699, %v695
    %v872 = vpack.c.b16 %v700, %v696
    %v873 = vpack.c.b16 %v701, %v697
    %v874 = vpack.c.b16 %v702, %v698
    %v875 = vpack.c.b16 %v707, %v703
    %v876 = vpack.c.b16 %v708, %v704
    %v877 = vpack.c.b16 %v709, %v705
    %v878 = vpack.c.b16 %v710, %v706
    %v879 = vpack.c.b16 %v715, %v711
    %v880 = vpack.c.b16 %v716, %v712
    %v881 = vpack.c.b16 %v717, %v713
    %v882 = vpack.c.b16 %v718, %v714
    %v883 = vpack.c.b16 %v723, %v719
    %v884 = vpack.c.b16 %v724, %v720
    %v885 = vpack.c.b16 %v725, %v721
    %v886 = vpack.c.b16 %v726, %v722
    %v887 = vpack.c.b16 %v731, %v727
    %v888 = vpack.c.b16 %v732, %v728
    %v889 = vpack.c.b16 %v733, %v729
    %v890 = vpack.c.b16 %v734, %v730
    %v891 = vpack.c.b16 %v739, %v735
    %v892 = vpack.c.b16 %v740, %v736
    %v893 = vpack.c.b16 %v741, %v737
    %v894 = vpack.c.b16 %v742, %v738
    %v895 = vpack.c.b16 %v747, %v743
    %v896 = vpack.c.b16 %v748, %v744
    %v897 = vpack.c.b16 %v749, %v745
    %v898 = vpack.c.b16 %v750, %v746
    %v899 = vpack.c.b16 %v755, %v751
    %v900 = vpack.c.b16 %v756, %v752
    %v901 = vpack.c.b16 %v757, %v753
    %v902 = vpack.c.b16 %v758, %v754
    %v903 = vpack.c.b16 %v763, %v759
    %v904 = vpack.c.b16 %v764, %v760
    %v905 = vpack.c.b16 %v765, %v761
    %v906 = vpack.c.b16 %v766, %v762
    %v907 = vpack.c.b16 %v771, %v767
    %v908 = vpack.c.b16 %v772, %v768
    %v909 = vpack.c.b16 %v773, %v769
    %v910 = vpack.c.b16 %v774, %v770
    %v911 = vpack.c.b16 %v779, %v775
    %v912 = vpack.c.b16 %v780, %v776
    %v913 = vpack.c.b16 %v781, %v777
    %v914 = vpack.c.b16 %v782, %v778
    %v915 = vpack.c.b16 %v787, %v783
    %v916 = vpack.c.b16 %v788, %v784
    %v917 = vpack.c.b16 %v789, %v785
    %v918 = vpack.c.b16 %v790, %v786
    %1047 = vmatprep.subr.bf16.mxu0 %v792
    %1048 = vmatpush1.bf16.msra.mxu0 %v791
    %1049 = vmatprep.subr.bf16.mxu0 %v796
    %1050 = vmatpush1.bf16.msra.mxu0 %v795
    %1051 = vmatprep.subr.bf16.mxu0 %v800
    %1052 = vmatpush1.bf16.msra.mxu0 %v799
    %1053 = vmatprep.subr.bf16.mxu0 %v804
    %1054 = vmatpush1.bf16.msra.mxu0 %v803
    %1055 = vmatprep.subr.bf16.mxu0 %v808
    %1056 = vmatpush1.bf16.msra.mxu0 %v807
    %1057 = vmatprep.subr.bf16.mxu0 %v812
    %1058 = vmatpush1.bf16.msra.mxu0 %v811
    %1059 = vmatprep.subr.bf16.mxu0 %v816
    %1060 = vmatpush1.bf16.msra.mxu0 %v815
    %1061 = vmatprep.subr.bf16.mxu0 %v820
    %1062 = vmatpush1.bf16.msra.mxu0 %v819
    %1063 = vmatprep.subr.bf16.mxu0 %v824
    %1064 = vmatpush1.bf16.msra.mxu0 %v823
    %1065 = vmatprep.subr.bf16.mxu0 %v828
    %1066 = vmatpush1.bf16.msra.mxu0 %v827
    %1067 = vmatprep.subr.bf16.mxu0 %v832
    %1068 = vmatpush1.bf16.msra.mxu0 %v831
    %1069 = vmatprep.subr.bf16.mxu0 %v836
    %1070 = vmatpush1.bf16.msra.mxu0 %v835
    %1071 = vmatprep.subr.bf16.mxu0 %v840
    %1072 = vmatpush1.bf16.msra.mxu0 %v839
    %1073 = vmatprep.subr.bf16.mxu0 %v844
    %1074 = vmatpush1.bf16.msra.mxu0 %v843
    %1075 = vmatprep.subr.bf16.mxu0 %v848
    %1076 = vmatpush1.bf16.msra.mxu0 %v847
    %1077 = vmatprep.subr.bf16.mxu0 %v852
    %1078 = vmatpush1.bf16.msra.mxu0 %v851
    %1079 = vmatprep.mubr.bf16.mxu0 %v148
    %1080 = vmatmul.mubr.bf16.gmra.mrb[0].mxu0 %v147
    %v1081 = vpop.f32.mrb[0].mxu0
    %v1082 = vadd.f32 0.0, %v1081
    %v1083 = vpop.f32.mrb[0].mxu0
    %v1084 = vadd.f32 0.0, %v1083
    %v1085 = vpop.f32.mrb[0].mxu0
    %v1086 = vpop.f32.mrb[0].mxu0
    %1087 = vdwg.mxu0
    %1088 = vmatprep.subr.bf16.mxu0 %v856
    %1089 = vmatpush1.bf16.msra.mxu0 %v855
    %1090 = vmatprep.subr.bf16.mxu0 %v860
    %1091 = vmatpush1.bf16.msra.mxu0 %v859
    %1092 = vmatprep.subr.bf16.mxu0 %v864
    %1093 = vmatpush1.bf16.msra.mxu0 %v863
    %1094 = vmatprep.subr.bf16.mxu0 %v868
    %1095 = vmatpush1.bf16.msra.mxu0 %v867
    %1096 = vmatprep.subr.bf16.mxu0 %v872
    %1097 = vmatpush1.bf16.msra.mxu0 %v871
    %1098 = vmatprep.subr.bf16.mxu0 %v876
    %1099 = vmatpush1.bf16.msra.mxu0 %v875
    %1100 = vmatprep.subr.bf16.mxu0 %v880
    %1101 = vmatpush1.bf16.msra.mxu0 %v879
    %1102 = vmatprep.subr.bf16.mxu0 %v884
    %1103 = vmatpush1.bf16.msra.mxu0 %v883
    %1104 = vmatprep.subr.bf16.mxu0 %v888
    %1105 = vmatpush1.bf16.msra.mxu0 %v887
    %1106 = vmatprep.subr.bf16.mxu0 %v892
    %1107 = vmatpush1.bf16.msra.mxu0 %v891
    %1108 = vmatprep.subr.bf16.mxu0 %v896
    %1109 = vmatpush1.bf16.msra.mxu0 %v895
    %1110 = vmatprep.subr.bf16.mxu0 %v900
    %1111 = vmatpush1.bf16.msra.mxu0 %v899
    %1112 = vmatprep.subr.bf16.mxu0 %v904
    %1113 = vmatpush1.bf16.msra.mxu0 %v903
    %1114 = vmatprep.subr.bf16.mxu0 %v908
    %1115 = vmatpush1.bf16.msra.mxu0 %v907
    %1116 = vmatprep.subr.bf16.mxu0 %v912
    %1117 = vmatpush1.bf16.msra.mxu0 %v911
    %1118 = vmatprep.subr.bf16.mxu0 %v916
    %1119 = vmatpush1.bf16.msra.mxu0 %v915
    %1120 = vmatprep.mubr.bf16.mxu0 %v150
    %1121 = vmatmul.mubr.bf16.gmra.mrb[0].mxu0 %v149
    %v1122 = vpop.f32.mrb[0].mxu0
    %v1123 = vadd.f32 %v1082, %v1122
    %v1124 = vpop.f32.mrb[0].mxu0
    %v1125 = vadd.f32 %v1084, %v1124
    %v1126 = vpop.f32.mrb[0].mxu0
    %v1127 = vpop.f32.mrb[0].mxu0
    %1128 = vdwg.mxu0
    %1129 = vmatprep.subr.bf16.mxu0 %v794
    %1130 = vmatpush1.bf16.msra.mxu0 %v793
    %1131 = vmatprep.subr.bf16.mxu0 %v798
    %1132 = vmatpush1.bf16.msra.mxu0 %v797
    %1133 = vmatprep.subr.bf16.mxu0 %v802
    %1134 = vmatpush1.bf16.msra.mxu0 %v801
    %1135 = vmatprep.subr.bf16.mxu0 %v806
    %1136 = vmatpush1.bf16.msra.mxu0 %v805
    %1137 = vmatprep.subr.bf16.mxu0 %v810
    %1138 = vmatpush1.bf16.msra.mxu0 %v809
    %1139 = vmatprep.subr.bf16.mxu0 %v814
    %1140 = vmatpush1.bf16.msra.mxu0 %v813
    %1141 = vmatprep.subr.bf16.mxu0 %v818
    %1142 = vmatpush1.bf16.msra.mxu0 %v817
    %1143 = vmatprep.subr.bf16.mxu0 %v822
    %1144 = vmatpush1.bf16.msra.mxu0 %v821
    %1145 = vmatprep.subr.bf16.mxu0 %v826
    %1146 = vmatpush1.bf16.msra.mxu0 %v825
    %1147 = vmatprep.subr.bf16.mxu0 %v830
    %1148 = vmatpush1.bf16.msra.mxu0 %v829
    %1149 = vmatprep.subr.bf16.mxu0 %v834
    %1150 = vmatpush1.bf16.msra.mxu0 %v833
    %1151 = vmatprep.subr.bf16.mxu0 %v838
    %1152 = vmatpush1.bf16.msra.mxu0 %v837
    %1153 = vmatprep.subr.bf16.mxu0 %v842
    %1154 = vmatpush1.bf16.msra.mxu0 %v841
    %1155 = vmatprep.subr.bf16.mxu0 %v846
    %1156 = vmatpush1.bf16.msra.mxu0 %v845
    %1157 = vmatprep.subr.bf16.mxu0 %v850
    %1158 = vmatpush1.bf16.msra.mxu0 %v849
    %1159 = vmatprep.subr.bf16.mxu0 %v854
    %1160 = vmatpush1.bf16.msra.mxu0 %v853
    %1161 = vmatprep.mubr.bf16.mxu0 %v148
    %1162 = vmatmul.mubr.bf16.gmra.mrb[0].mxu0 %v147
    %v1163 = vpop.f32.mrb[0].mxu0
    %v1164 = vadd.f32 0.0, %v1163
    %v1165 = vpop.f32.mrb[0].mxu0
    %v1166 = vadd.f32 0.0, %v1165
    %v1167 = vpop.f32.mrb[0].mxu0
    %v1168 = vpop.f32.mrb[0].mxu0
    %1169 = vdwg.mxu0
    %1170 = vmatprep.subr.bf16.mxu0 %v858
    %1171 = vmatpush1.bf16.msra.mxu0 %v857
    %1172 = vmatprep.subr.bf16.mxu0 %v862
    %1173 = vmatpush1.bf16.msra.mxu0 %v861
    %1174 = vmatprep.subr.bf16.mxu0 %v866
    %1175 = vmatpush1.bf16.msra.mxu0 %v865
    %1176 = vmatprep.subr.bf16.mxu0 %v870
    %1177 = vmatpush1.bf16.msra.mxu0 %v869
    %1178 = vmatprep.subr.bf16.mxu0 %v874
    %1179 = vmatpush1.bf16.msra.mxu0 %v873
    %1180 = vmatprep.subr.bf16.mxu0 %v878
    %1181 = vmatpush1.bf16.msra.mxu0 %v877
    %1182 = vmatprep.subr.bf16.mxu0 %v882
    %1183 = vmatpush1.bf16.msra.mxu0 %v881
    %1184 = vmatprep.subr.bf16.mxu0 %v886
    %1185 = vmatpush1.bf16.msra.mxu0 %v885
    %1186 = vmatprep.subr.bf16.mxu0 %v890
    %1187 = vmatpush1.bf16.msra.mxu0 %v889
    %1188 = vmatprep.subr.bf16.mxu0 %v894
    %1189 = vmatpush1.bf16.msra.mxu0 %v893
    %1190 = vmatprep.subr.bf16.mxu0 %v898
    %1191 = vmatpush1.bf16.msra.mxu0 %v897
    %1192 = vmatprep.subr.bf16.mxu0 %v902
    %1193 = vmatpush1.bf16.msra.mxu0 %v901
    %1194 = vmatprep.subr.bf16.mxu0 %v906
    %1195 = vmatpush1.bf16.msra.mxu0 %v905
    %1196 = vmatprep.subr.bf16.mxu0 %v910
    %1197 = vmatpush1.bf16.msra.mxu0 %v909
    %1198 = vmatprep.subr.bf16.mxu0 %v914
    %1199 = vmatpush1.bf16.msra.mxu0 %v913
    %1200 = vmatprep.subr.bf16.mxu0 %v918
    %1201 = vmatpush1.bf16.msra.mxu0 %v917
    %1202 = vmatprep.mubr.bf16.mxu0 %v150
    %1203 = vmatmul.mubr.bf16.gmra.mrb[0].mxu0 %v149
    %v1204 = vpop.f32.mrb[0].mxu0
    %v1205 = vadd.f32 %v1164, %v1204
    %v1206 = vpop.f32.mrb[0].mxu0
    %v1207 = vadd.f32 %v1166, %v1206
    %v1208 = vpop.f32.mrb[0].mxu0
    %v1209 = vpop.f32.mrb[0].mxu0
    %1210 = vdwg.mxu0
    %v1339 = vunpack.c.l.b16 %v151
    %v1340 = vunpack.c.h.b16 %v151
    %v1341 = vunpack.c.l.b16 %v152
    %v1342 = vunpack.c.h.b16 %v152
    %v1343 = vunpack.c.l.b16 %v153
    %v1344 = vunpack.c.h.b16 %v153
    %v1345 = vunpack.c.l.b16 %v154
    %v1346 = vunpack.c.h.b16 %v154
    %v1347 = vunpack.c.l.b16 %v155
    %v1348 = vunpack.c.h.b16 %v155
    %v1349 = vunpack.c.l.b16 %v156
    %v1350 = vunpack.c.h.b16 %v156
    %v1351 = vunpack.c.l.b16 %v157
    %v1352 = vunpack.c.h.b16 %v157
    %v1353 = vunpack.c.l.b16 %v158
    %v1354 = vunpack.c.h.b16 %v158
    %v1355 = vunpack.c.l.b16 %v159
    %v1356 = vunpack.c.h.b16 %v159
    %v1357 = vunpack.c.l.b16 %v160
    %v1358 = vunpack.c.h.b16 %v160
    %v1359 = vunpack.c.l.b16 %v161
    %v1360 = vunpack.c.h.b16 %v161
    %v1361 = vunpack.c.l.b16 %v162
    %v1362 = vunpack.c.h.b16 %v162
    %v1363 = vunpack.c.l.b16 %v163
    %v1364 = vunpack.c.h.b16 %v163
    %v1365 = vunpack.c.l.b16 %v164
    %v1366 = vunpack.c.h.b16 %v164
    %v1367 = vunpack.c.l.b16 %v165
    %v1368 = vunpack.c.h.b16 %v165
    %v1369 = vunpack.c.l.b16 %v166
    %v1370 = vunpack.c.h.b16 %v166
    %v1371 = vunpack.c.l.b16 %v167
    %v1372 = vunpack.c.h.b16 %v167
    %v1373 = vunpack.c.l.b16 %v168
    %v1374 = vunpack.c.h.b16 %v168
    %v1375 = vunpack.c.l.b16 %v169
    %v1376 = vunpack.c.h.b16 %v169
    %v1377 = vunpack.c.l.b16 %v170
    %v1378 = vunpack.c.h.b16 %v170
    %v1379 = vunpack.c.l.b16 %v171
    %v1380 = vunpack.c.h.b16 %v171
    %v1381 = vunpack.c.l.b16 %v172
    %v1382 = vunpack.c.h.b16 %v172
    %v1383 = vunpack.c.l.b16 %v173
    %v1384 = vunpack.c.h.b16 %v173
    %v1385 = vunpack.c.l.b16 %v174
    %v1386 = vunpack.c.h.b16 %v174
    %v1387 = vunpack.c.l.b16 %v175
    %v1388 = vunpack.c.h.b16 %v175
    %v1389 = vunpack.c.l.b16 %v176
    %v1390 = vunpack.c.h.b16 %v176
    %v1391 = vunpack.c.l.b16 %v177
    %v1392 = vunpack.c.h.b16 %v177
    %v1393 = vunpack.c.l.b16 %v178
    %v1394 = vunpack.c.h.b16 %v178
    %v1395 = vunpack.c.l.b16 %v179
    %v1396 = vunpack.c.h.b16 %v179
    %v1397 = vunpack.c.l.b16 %v180
    %v1398 = vunpack.c.h.b16 %v180
    %v1399 = vunpack.c.l.b16 %v181
    %v1400 = vunpack.c.h.b16 %v181
    %v1401 = vunpack.c.l.b16 %v182
    %v1402 = vunpack.c.h.b16 %v182
    %v1403 = vunpack.c.l.b16 %v183
    %v1404 = vunpack.c.h.b16 %v183
    %v1405 = vunpack.c.l.b16 %v184
    %v1406 = vunpack.c.h.b16 %v184
    %v1407 = vunpack.c.l.b16 %v185
    %v1408 = vunpack.c.h.b16 %v185
    %v1409 = vunpack.c.l.b16 %v186
    %v1410 = vunpack.c.h.b16 %v186
    %v1411 = vunpack.c.l.b16 %v187
    %v1412 = vunpack.c.h.b16 %v187
    %v1413 = vunpack.c.l.b16 %v188
    %v1414 = vunpack.c.h.b16 %v188
    %v1415 = vunpack.c.l.b16 %v189
    %v1416 = vunpack.c.h.b16 %v189
    %v1417 = vunpack.c.l.b16 %v190
    %v1418 = vunpack.c.h.b16 %v190
    %v1419 = vunpack.c.l.b16 %v191
    %v1420 = vunpack.c.h.b16 %v191
    %v1421 = vunpack.c.l.b16 %v192
    %v1422 = vunpack.c.h.b16 %v192
    %v1423 = vunpack.c.l.b16 %v193
    %v1424 = vunpack.c.h.b16 %v193
    %v1425 = vunpack.c.l.b16 %v194
    %v1426 = vunpack.c.h.b16 %v194
    %v1427 = vunpack.c.l.b16 %v195
    %v1428 = vunpack.c.h.b16 %v195
    %v1429 = vunpack.c.l.b16 %v196
    %v1430 = vunpack.c.h.b16 %v196
    %v1431 = vunpack.c.l.b16 %v197
    %v1432 = vunpack.c.h.b16 %v197
    %v1433 = vunpack.c.l.b16 %v198
    %v1434 = vunpack.c.h.b16 %v198
    %v1435 = vunpack.c.l.b16 %v199
    %v1436 = vunpack.c.h.b16 %v199
    %v1437 = vunpack.c.l.b16 %v200
    %v1438 = vunpack.c.h.b16 %v200
    %v1439 = vunpack.c.l.b16 %v201
    %v1440 = vunpack.c.h.b16 %v201
    %v1441 = vunpack.c.l.b16 %v202
    %v1442 = vunpack.c.h.b16 %v202
    %v1443 = vunpack.c.l.b16 %v203
    %v1444 = vunpack.c.h.b16 %v203
    %v1445 = vunpack.c.l.b16 %v204
    %v1446 = vunpack.c.h.b16 %v204
    %v1447 = vunpack.c.l.b16 %v205
    %v1448 = vunpack.c.h.b16 %v205
    %v1449 = vunpack.c.l.b16 %v206
    %v1450 = vunpack.c.h.b16 %v206
    %v1451 = vunpack.c.l.b16 %v207
    %v1452 = vunpack.c.h.b16 %v207
    %v1453 = vunpack.c.l.b16 %v208
    %v1454 = vunpack.c.h.b16 %v208
    %v1455 = vunpack.c.l.b16 %v209
    %v1456 = vunpack.c.h.b16 %v209
    %v1457 = vunpack.c.l.b16 %v210
    %v1458 = vunpack.c.h.b16 %v210
    %v1459 = vunpack.c.l.b16 %v211
    %v1460 = vunpack.c.h.b16 %v211
    %v1461 = vunpack.c.l.b16 %v212
    %v1462 = vunpack.c.h.b16 %v212
    %v1463 = vunpack.c.l.b16 %v213
    %v1464 = vunpack.c.h.b16 %v213
    %v1465 = vunpack.c.l.b16 %v214
    %v1466 = vunpack.c.h.b16 %v214
    %v1467 = vunpack.c.l.b16 %v215
    %v1468 = vunpack.c.h.b16 %v215
    %v1469 = vunpack.c.l.b16 %v216
    %v1470 = vunpack.c.h.b16 %v216
    %v1471 = vunpack.c.l.b16 %v217
    %v1472 = vunpack.c.h.b16 %v217
    %v1473 = vunpack.c.l.b16 %v218
    %v1474 = vunpack.c.h.b16 %v218
    %v1475 = vunpack.c.l.b16 %v219
    %v1476 = vunpack.c.h.b16 %v219
    %v1477 = vunpack.c.l.b16 %v220
    %v1478 = vunpack.c.h.b16 %v220
    %v1479 = vunpack.c.l.b16 %v221
    %v1480 = vunpack.c.h.b16 %v221
    %v1481 = vunpack.c.l.b16 %v222
    %v1482 = vunpack.c.h.b16 %v222
    %v1483 = vunpack.c.l.b16 %v223
    %v1484 = vunpack.c.h.b16 %v223
    %v1485 = vunpack.c.l.b16 %v224
    %v1486 = vunpack.c.h.b16 %v224
    %v1487 = vunpack.c.l.b16 %v225
    %v1488 = vunpack.c.h.b16 %v225
    %v1489 = vunpack.c.l.b16 %v226
    %v1490 = vunpack.c.h.b16 %v226
    %v1491 = vunpack.c.l.b16 %v227
    %v1492 = vunpack.c.h.b16 %v227
    %v1493 = vunpack.c.l.b16 %v228
    %v1494 = vunpack.c.h.b16 %v228
    %v1495 = vunpack.c.l.b16 %v229
    %v1496 = vunpack.c.h.b16 %v229
    %v1497 = vunpack.c.l.b16 %v230
    %v1498 = vunpack.c.h.b16 %v230
    %v1499 = vunpack.c.l.b16 %v231
    %v1500 = vunpack.c.h.b16 %v231
    %v1501 = vunpack.c.l.b16 %v232
    %v1502 = vunpack.c.h.b16 %v232
    %v1503 = vunpack.c.l.b16 %v233
    %v1504 = vunpack.c.h.b16 %v233
    %v1505 = vunpack.c.l.b16 %v234
    %v1506 = vunpack.c.h.b16 %v234
    %v1507 = vunpack.c.l.b16 %v235
    %v1508 = vunpack.c.h.b16 %v235
    %v1509 = vunpack.c.l.b16 %v236
    %v1510 = vunpack.c.h.b16 %v236
    %v1511 = vunpack.c.l.b16 %v237
    %v1512 = vunpack.c.h.b16 %v237
    %v1513 = vunpack.c.l.b16 %v238
    %v1514 = vunpack.c.h.b16 %v238
    %v1515 = vunpack.c.l.b16 %v239
    %v1516 = vunpack.c.h.b16 %v239
    %v1517 = vunpack.c.l.b16 %v240
    %v1518 = vunpack.c.h.b16 %v240
    %v1519 = vunpack.c.l.b16 %v241
    %v1520 = vunpack.c.h.b16 %v241
    %v1521 = vunpack.c.l.b16 %v242
    %v1522 = vunpack.c.h.b16 %v242
    %v1523 = vunpack.c.l.b16 %v243
    %v1524 = vunpack.c.h.b16 %v243
    %v1525 = vunpack.c.l.b16 %v244
    %v1526 = vunpack.c.h.b16 %v244
    %v1527 = vunpack.c.l.b16 %v245
    %v1528 = vunpack.c.h.b16 %v245
    %v1529 = vunpack.c.l.b16 %v246
    %v1530 = vunpack.c.h.b16 %v246
    %v1531 = vunpack.c.l.b16 %v247
    %v1532 = vunpack.c.h.b16 %v247
    %v1533 = vunpack.c.l.b16 %v248
    %v1534 = vunpack.c.h.b16 %v248
    %v1535 = vunpack.c.l.b16 %v249
    %v1536 = vunpack.c.h.b16 %v249
    %v1537 = vunpack.c.l.b16 %v250
    %v1538 = vunpack.c.h.b16 %v250
    %v1539 = vunpack.c.l.b16 %v251
    %v1540 = vunpack.c.h.b16 %v251
    %v1541 = vunpack.c.l.b16 %v252
    %v1542 = vunpack.c.h.b16 %v252
    %v1543 = vunpack.c.l.b16 %v253
    %v1544 = vunpack.c.h.b16 %v253
    %v1545 = vunpack.c.l.b16 %v254
    %v1546 = vunpack.c.h.b16 %v254
    %v1547 = vunpack.c.l.b16 %v255
    %v1548 = vunpack.c.h.b16 %v255
    %v1549 = vunpack.c.l.b16 %v256
    %v1550 = vunpack.c.h.b16 %v256
    %v1551 = vunpack.c.l.b16 %v257
    %v1552 = vunpack.c.h.b16 %v257
    %v1553 = vunpack.c.l.b16 %v258
    %v1554 = vunpack.c.h.b16 %v258
    %v1555 = vunpack.c.l.b16 %v259
    %v1556 = vunpack.c.h.b16 %v259
    %v1557 = vunpack.c.l.b16 %v260
    %v1558 = vunpack.c.h.b16 %v260
    %v1559 = vunpack.c.l.b16 %v261
    %v1560 = vunpack.c.h.b16 %v261
    %v1561 = vunpack.c.l.b16 %v262
    %v1562 = vunpack.c.h.b16 %v262
    %v1563 = vunpack.c.l.b16 %v263
    %v1564 = vunpack.c.h.b16 %v263
    %v1565 = vunpack.c.l.b16 %v264
    %v1566 = vunpack.c.h.b16 %v264
    %v1567 = vunpack.c.l.b16 %v265
    %v1568 = vunpack.c.h.b16 %v265
    %v1569 = vunpack.c.l.b16 %v266
    %v1570 = vunpack.c.h.b16 %v266
    %v1571 = vunpack.c.l.b16 %v267
    %v1572 = vunpack.c.h.b16 %v267
    %v1573 = vunpack.c.l.b16 %v268
    %v1574 = vunpack.c.h.b16 %v268
    %v1575 = vunpack.c.l.b16 %v269
    %v1576 = vunpack.c.h.b16 %v269
    %v1577 = vunpack.c.l.b16 %v270
    %v1578 = vunpack.c.h.b16 %v270
    %v1579 = vunpack.c.l.b16 %v271
    %v1580 = vunpack.c.h.b16 %v271
    %v1581 = vunpack.c.l.b16 %v272
    %v1582 = vunpack.c.h.b16 %v272
    %v1583 = vunpack.c.l.b16 %v273
    %v1584 = vunpack.c.h.b16 %v273
    %v1585 = vunpack.c.l.b16 %v274
    %v1586 = vunpack.c.h.b16 %v274
    %v1587 = vunpack.c.l.b16 %v275
    %v1588 = vunpack.c.h.b16 %v275
    %v1589 = vunpack.c.l.b16 %v276
    %v1590 = vunpack.c.h.b16 %v276
    %v1591 = vunpack.c.l.b16 %v277
    %v1592 = vunpack.c.h.b16 %v277
    %v1593 = vunpack.c.l.b16 %v278
    %v1594 = vunpack.c.h.b16 %v278
    %v1595 = vpack.c.b16 %v1343, %v1339
    %v1596 = vpack.c.b16 %v1344, %v1340
    %v1597 = vpack.c.b16 %v1345, %v1341
    %v1598 = vpack.c.b16 %v1346, %v1342
    %v1599 = vpack.c.b16 %v1351, %v1347
    %v1600 = vpack.c.b16 %v1352, %v1348
    %v1601 = vpack.c.b16 %v1353, %v1349
    %v1602 = vpack.c.b16 %v1354, %v1350
    %v1603 = vpack.c.b16 %v1359, %v1355
    %v1604 = vpack.c.b16 %v1360, %v1356
    %v1605 = vpack.c.b16 %v1361, %v1357
    %v1606 = vpack.c.b16 %v1362, %v1358
    %v1607 = vpack.c.b16 %v1367, %v1363
    %v1608 = vpack.c.b16 %v1368, %v1364
    %v1609 = vpack.c.b16 %v1369, %v1365
    %v1610 = vpack.c.b16 %v1370, %v1366
    %v1611 = vpack.c.b16 %v1375, %v1371
    %v1612 = vpack.c.b16 %v1376, %v1372
    %v1613 = vpack.c.b16 %v1377, %v1373
    %v1614 = vpack.c.b16 %v1378, %v1374
    %v1615 = vpack.c.b16 %v1383, %v1379
    %v1616 = vpack.c.b16 %v1384, %v1380
    %v1617 = vpack.c.b16 %v1385, %v1381
    %v1618 = vpack.c.b16 %v1386, %v1382
    %v1619 = vpack.c.b16 %v1391, %v1387
    %v1620 = vpack.c.b16 %v1392, %v1388
    %v1621 = vpack.c.b16 %v1393, %v1389
    %v1622 = vpack.c.b16 %v1394, %v1390
    %v1623 = vpack.c.b16 %v1399, %v1395
    %v1624 = vpack.c.b16 %v1400, %v1396
    %v1625 = vpack.c.b16 %v1401, %v1397
    %v1626 = vpack.c.b16 %v1402, %v1398
    %v1627 = vpack.c.b16 %v1407, %v1403
    %v1628 = vpack.c.b16 %v1408, %v1404
    %v1629 = vpack.c.b16 %v1409, %v1405
    %v1630 = vpack.c.b16 %v1410, %v1406
    %v1631 = vpack.c.b16 %v1415, %v1411
    %v1632 = vpack.c.b16 %v1416, %v1412
    %v1633 = vpack.c.b16 %v1417, %v1413
    %v1634 = vpack.c.b16 %v1418, %v1414
    %v1635 = vpack.c.b16 %v1423, %v1419
    %v1636 = vpack.c.b16 %v1424, %v1420
    %v1637 = vpack.c.b16 %v1425, %v1421
    %v1638 = vpack.c.b16 %v1426, %v1422
    %v1639 = vpack.c.b16 %v1431, %v1427
    %v1640 = vpack.c.b16 %v1432, %v1428
    %v1641 = vpack.c.b16 %v1433, %v1429
    %v1642 = vpack.c.b16 %v1434, %v1430
    %v1643 = vpack.c.b16 %v1439, %v1435
    %v1644 = vpack.c.b16 %v1440, %v1436
    %v1645 = vpack.c.b16 %v1441, %v1437
    %v1646 = vpack.c.b16 %v1442, %v1438
    %v1647 = vpack.c.b16 %v1447, %v1443
    %v1648 = vpack.c.b16 %v1448, %v1444
    %v1649 = vpack.c.b16 %v1449, %v1445
    %v1650 = vpack.c.b16 %v1450, %v1446
    %v1651 = vpack.c.b16 %v1455, %v1451
    %v1652 = vpack.c.b16 %v1456, %v1452
    %v1653 = vpack.c.b16 %v1457, %v1453
    %v1654 = vpack.c.b16 %v1458, %v1454
    %v1655 = vpack.c.b16 %v1463, %v1459
    %v1656 = vpack.c.b16 %v1464, %v1460
    %v1657 = vpack.c.b16 %v1465, %v1461
    %v1658 = vpack.c.b16 %v1466, %v1462
    %v1659 = vpack.c.b16 %v1471, %v1467
    %v1660 = vpack.c.b16 %v1472, %v1468
    %v1661 = vpack.c.b16 %v1473, %v1469
    %v1662 = vpack.c.b16 %v1474, %v1470
    %v1663 = vpack.c.b16 %v1479, %v1475
    %v1664 = vpack.c.b16 %v1480, %v1476
    %v1665 = vpack.c.b16 %v1481, %v1477
    %v1666 = vpack.c.b16 %v1482, %v1478
    %v1667 = vpack.c.b16 %v1487, %v1483
    %v1668 = vpack.c.b16 %v1488, %v1484
    %v1669 = vpack.c.b16 %v1489, %v1485
    %v1670 = vpack.c.b16 %v1490, %v1486
    %v1671 = vpack.c.b16 %v1495, %v1491
    %v1672 = vpack.c.b16 %v1496, %v1492
    %v1673 = vpack.c.b16 %v1497, %v1493
    %v1674 = vpack.c.b16 %v1498, %v1494
    %v1675 = vpack.c.b16 %v1503, %v1499
    %v1676 = vpack.c.b16 %v1504, %v1500
    %v1677 = vpack.c.b16 %v1505, %v1501
    %v1678 = vpack.c.b16 %v1506, %v1502
    %v1679 = vpack.c.b16 %v1511, %v1507
    %v1680 = vpack.c.b16 %v1512, %v1508
    %v1681 = vpack.c.b16 %v1513, %v1509
    %v1682 = vpack.c.b16 %v1514, %v1510
    %v1683 = vpack.c.b16 %v1519, %v1515
    %v1684 = vpack.c.b16 %v1520, %v1516
    %v1685 = vpack.c.b16 %v1521, %v1517
    %v1686 = vpack.c.b16 %v1522, %v1518
    %v1687 = vpack.c.b16 %v1527, %v1523
    %v1688 = vpack.c.b16 %v1528, %v1524
    %v1689 = vpack.c.b16 %v1529, %v1525
    %v1690 = vpack.c.b16 %v1530, %v1526
    %v1691 = vpack.c.b16 %v1535, %v1531
    %v1692 = vpack.c.b16 %v1536, %v1532
    %v1693 = vpack.c.b16 %v1537, %v1533
    %v1694 = vpack.c.b16 %v1538, %v1534
    %v1695 = vpack.c.b16 %v1543, %v1539
    %v1696 = vpack.c.b16 %v1544, %v1540
    %v1697 = vpack.c.b16 %v1545, %v1541
    %v1698 = vpack.c.b16 %v1546, %v1542
    %v1699 = vpack.c.b16 %v1551, %v1547
    %v1700 = vpack.c.b16 %v1552, %v1548
    %v1701 = vpack.c.b16 %v1553, %v1549
    %v1702 = vpack.c.b16 %v1554, %v1550
    %v1703 = vpack.c.b16 %v1559, %v1555
    %v1704 = vpack.c.b16 %v1560, %v1556
    %v1705 = vpack.c.b16 %v1561, %v1557
    %v1706 = vpack.c.b16 %v1562, %v1558
    %v1707 = vpack.c.b16 %v1567, %v1563
    %v1708 = vpack.c.b16 %v1568, %v1564
    %v1709 = vpack.c.b16 %v1569, %v1565
    %v1710 = vpack.c.b16 %v1570, %v1566
    %v1711 = vpack.c.b16 %v1575, %v1571
    %v1712 = vpack.c.b16 %v1576, %v1572
    %v1713 = vpack.c.b16 %v1577, %v1573
    %v1714 = vpack.c.b16 %v1578, %v1574
    %v1715 = vpack.c.b16 %v1583, %v1579
    %v1716 = vpack.c.b16 %v1584, %v1580
    %v1717 = vpack.c.b16 %v1585, %v1581
    %v1718 = vpack.c.b16 %v1586, %v1582
    %v1719 = vpack.c.b16 %v1591, %v1587
    %v1720 = vpack.c.b16 %v1592, %v1588
    %v1721 = vpack.c.b16 %v1593, %v1589
    %v1722 = vpack.c.b16 %v1594, %v1590
    %1851 = vmatprep.subr.bf16.mxu0 %v1596
    %1852 = vmatpush1.bf16.msra.mxu0 %v1595
    %1853 = vmatprep.subr.bf16.mxu0 %v1600
    %1854 = vmatpush1.bf16.msra.mxu0 %v1599
    %1855 = vmatprep.subr.bf16.mxu0 %v1604
    %1856 = vmatpush1.bf16.msra.mxu0 %v1603
    %1857 = vmatprep.subr.bf16.mxu0 %v1608
    %1858 = vmatpush1.bf16.msra.mxu0 %v1607
    %1859 = vmatprep.subr.bf16.mxu0 %v1612
    %1860 = vmatpush1.bf16.msra.mxu0 %v1611
    %1861 = vmatprep.subr.bf16.mxu0 %v1616
    %1862 = vmatpush1.bf16.msra.mxu0 %v1615
    %1863 = vmatprep.subr.bf16.mxu0 %v1620
    %1864 = vmatpush1.bf16.msra.mxu0 %v1619
    %1865 = vmatprep.subr.bf16.mxu0 %v1624
    %1866 = vmatpush1.bf16.msra.mxu0 %v1623
    %1867 = vmatprep.subr.bf16.mxu0 %v1628
    %1868 = vmatpush1.bf16.msra.mxu0 %v1627
    %1869 = vmatprep.subr.bf16.mxu0 %v1632
    %1870 = vmatpush1.bf16.msra.mxu0 %v1631
    %1871 = vmatprep.subr.bf16.mxu0 %v1636
    %1872 = vmatpush1.bf16.msra.mxu0 %v1635
    %1873 = vmatprep.subr.bf16.mxu0 %v1640
    %1874 = vmatpush1.bf16.msra.mxu0 %v1639
    %1875 = vmatprep.subr.bf16.mxu0 %v1644
    %1876 = vmatpush1.bf16.msra.mxu0 %v1643
    %1877 = vmatprep.subr.bf16.mxu0 %v1648
    %1878 = vmatpush1.bf16.msra.mxu0 %v1647
    %1879 = vmatprep.subr.bf16.mxu0 %v1652
    %1880 = vmatpush1.bf16.msra.mxu0 %v1651
    %1881 = vmatprep.subr.bf16.mxu0 %v1656
    %1882 = vmatpush1.bf16.msra.mxu0 %v1655
    %1883 = vmatprep.mubr.bf16.mxu0 %v121
    %1884 = vmatmul.mubr.bf16.gmra.mrb[0].mxu0 %v120
    %v1885 = vpop.f32.mrb[0].mxu0
    %v1886 = vadd.f32 %v1123, %v1885
    %v1887 = vpop.f32.mrb[0].mxu0
    %v1888 = vadd.f32 %v1125, %v1887
    %v1889 = vpop.f32.mrb[0].mxu0
    %v1890 = vpop.f32.mrb[0].mxu0
    %1891 = vdwg.mxu0
    %1892 = vmatprep.subr.bf16.mxu0 %v1660
    %1893 = vmatpush1.bf16.msra.mxu0 %v1659
    %1894 = vmatprep.subr.bf16.mxu0 %v1664
    %1895 = vmatpush1.bf16.msra.mxu0 %v1663
    %1896 = vmatprep.subr.bf16.mxu0 %v1668
    %1897 = vmatpush1.bf16.msra.mxu0 %v1667
    %1898 = vmatprep.subr.bf16.mxu0 %v1672
    %1899 = vmatpush1.bf16.msra.mxu0 %v1671
    %1900 = vmatprep.subr.bf16.mxu0 %v1676
    %1901 = vmatpush1.bf16.msra.mxu0 %v1675
    %1902 = vmatprep.subr.bf16.mxu0 %v1680
    %1903 = vmatpush1.bf16.msra.mxu0 %v1679
    %1904 = vmatprep.subr.bf16.mxu0 %v1684
    %1905 = vmatpush1.bf16.msra.mxu0 %v1683
    %1906 = vmatprep.subr.bf16.mxu0 %v1688
    %1907 = vmatpush1.bf16.msra.mxu0 %v1687
    %1908 = vmatprep.subr.bf16.mxu0 %v1692
    %1909 = vmatpush1.bf16.msra.mxu0 %v1691
    %1910 = vmatprep.subr.bf16.mxu0 %v1696
    %1911 = vmatpush1.bf16.msra.mxu0 %v1695
    %1912 = vmatprep.subr.bf16.mxu0 %v1700
    %1913 = vmatpush1.bf16.msra.mxu0 %v1699
    %1914 = vmatprep.subr.bf16.mxu0 %v1704
    %1915 = vmatpush1.bf16.msra.mxu0 %v1703
    %1916 = vmatprep.subr.bf16.mxu0 %v1708
    %1917 = vmatpush1.bf16.msra.mxu0 %v1707
    %1918 = vmatprep.subr.bf16.mxu0 %v1712
    %1919 = vmatpush1.bf16.msra.mxu0 %v1711
    %1920 = vmatprep.subr.bf16.mxu0 %v1716
    %1921 = vmatpush1.bf16.msra.mxu0 %v1715
    %1922 = vmatprep.subr.bf16.mxu0 %v1720
    %1923 = vmatpush1.bf16.msra.mxu0 %v1719
    %1924 = vmatprep.mubr.bf16.mxu0 %v123
    %1925 = vmatmul.mubr.bf16.gmra.mrb[0].mxu0 %v122
    %v1926 = vpop.f32.mrb[0].mxu0
    %v1927 = vadd.f32 %v1886, %v1926
    %v1928 = vpop.f32.mrb[0].mxu0
    %v1929 = vadd.f32 %v1888, %v1928
    %v1930 = vpop.f32.mrb[0].mxu0
    %v1931 = vpop.f32.mrb[0].mxu0
    %1932 = vdwg.mxu0
    %1933 = vmatprep.subr.bf16.mxu0 %v1598
    %1934 = vmatpush1.bf16.msra.mxu0 %v1597
    %1935 = vmatprep.subr.bf16.mxu0 %v1602
    %1936 = vmatpush1.bf16.msra.mxu0 %v1601
    %1937 = vmatprep.subr.bf16.mxu0 %v1606
    %1938 = vmatpush1.bf16.msra.mxu0 %v1605
    %1939 = vmatprep.subr.bf16.mxu0 %v1610
    %1940 = vmatpush1.bf16.msra.mxu0 %v1609
    %1941 = vmatprep.subr.bf16.mxu0 %v1614
    %1942 = vmatpush1.bf16.msra.mxu0 %v1613
    %1943 = vmatprep.subr.bf16.mxu0 %v1618
    %1944 = vmatpush1.bf16.msra.mxu0 %v1617
    %1945 = vmatprep.subr.bf16.mxu0 %v1622
    %1946 = vmatpush1.bf16.msra.mxu0 %v1621
    %1947 = vmatprep.subr.bf16.mxu0 %v1626
    %1948 = vmatpush1.bf16.msra.mxu0 %v1625
    %1949 = vmatprep.subr.bf16.mxu0 %v1630
    %1950 = vmatpush1.bf16.msra.mxu0 %v1629
    %1951 = vmatprep.subr.bf16.mxu0 %v1634
    %1952 = vmatpush1.bf16.msra.mxu0 %v1633
    %1953 = vmatprep.subr.bf16.mxu0 %v1638
    %1954 = vmatpush1.bf16.msra.mxu0 %v1637
    %1955 = vmatprep.subr.bf16.mxu0 %v1642
    %1956 = vmatpush1.bf16.msra.mxu0 %v1641
    %1957 = vmatprep.subr.bf16.mxu0 %v1646
    %1958 = vmatpush1.bf16.msra.mxu0 %v1645
    %1959 = vmatprep.subr.bf16.mxu0 %v1650
    %1960 = vmatpush1.bf16.msra.mxu0 %v1649
    %1961 = vmatprep.subr.bf16.mxu0 %v1654
    %1962 = vmatpush1.bf16.msra.mxu0 %v1653
    %1963 = vmatprep.subr.bf16.mxu0 %v1658
    %1964 = vmatpush1.bf16.msra.mxu0 %v1657
    %1965 = vmatprep.mubr.bf16.mxu0 %v121
    %1966 = vmatmul.mubr.bf16.gmra.mrb[0].mxu0 %v120
    %v1967 = vpop.f32.mrb[0].mxu0
    %v1968 = vadd.f32 %v1205, %v1967
    %v1969 = vpop.f32.mrb[0].mxu0
    %v1970 = vadd.f32 %v1207, %v1969
    %v1971 = vpop.f32.mrb[0].mxu0
    %v1972 = vpop.f32.mrb[0].mxu0
    %1973 = vdwg.mxu0
    %1974 = vmatprep.subr.bf16.mxu0 %v1662
    %1975 = vmatpush1.bf16.msra.mxu0 %v1661
    %1976 = vmatprep.subr.bf16.mxu0 %v1666
    %1977 = vmatpush1.bf16.msra.mxu0 %v1665
    %1978 = vmatprep.subr.bf16.mxu0 %v1670
    %1979 = vmatpush1.bf16.msra.mxu0 %v1669
    %1980 = vmatprep.subr.bf16.mxu0 %v1674
    %1981 = vmatpush1.bf16.msra.mxu0 %v1673
    %1982 = vmatprep.subr.bf16.mxu0 %v1678
    %1983 = vmatpush1.bf16.msra.mxu0 %v1677
    %1984 = vmatprep.subr.bf16.mxu0 %v1682
    %1985 = vmatpush1.bf16.msra.mxu0 %v1681
    %1986 = vmatprep.subr.bf16.mxu0 %v1686
    %1987 = vmatpush1.bf16.msra.mxu0 %v1685
    %1988 = vmatprep.subr.bf16.mxu0 %v1690
    %1989 = vmatpush1.bf16.msra.mxu0 %v1689
    %1990 = vmatprep.subr.bf16.mxu0 %v1694
    %1991 = vmatpush1.bf16.msra.mxu0 %v1693
    %1992 = vmatprep.subr.bf16.mxu0 %v1698
    %1993 = vmatpush1.bf16.msra.mxu0 %v1697
    %1994 = vmatprep.subr.bf16.mxu0 %v1702
    %1995 = vmatpush1.bf16.msra.mxu0 %v1701
    %1996 = vmatprep.subr.bf16.mxu0 %v1706
    %1997 = vmatpush1.bf16.msra.mxu0 %v1705
    %1998 = vmatprep.subr.bf16.mxu0 %v1710
    %1999 = vmatpush1.bf16.msra.mxu0 %v1709
    %2000 = vmatprep.subr.bf16.mxu0 %v1714
    %2001 = vmatpush1.bf16.msra.mxu0 %v1713
    %2002 = vmatprep.subr.bf16.mxu0 %v1718
    %2003 = vmatpush1.bf16.msra.mxu0 %v1717
    %2004 = vmatprep.subr.bf16.mxu0 %v1722
    %2005 = vmatpush1.bf16.msra.mxu0 %v1721
    %2006 = vmatprep.mubr.bf16.mxu0 %v123
    %2007 = vmatmul.mubr.bf16.gmra.mrb[0].mxu0 %v122
    %v2008 = vpop.f32.mrb[0].mxu0
    %v2009 = vadd.f32 %v1968, %v2008
    %v2010 = vpop.f32.mrb[0].mxu0
    %v2011 = vadd.f32 %v1970, %v2010
    %v2012 = vpop.f32.mrb[0].mxu0
    %v2013 = vpop.f32.mrb[0].mxu0
    %2014 = vdwg.mxu0
    %v2015 = vld [vmem:[%s3] sm:$0xf]
    %v2017 = vlaneseq
    %v2018 = vshrl.u32 %v2017, 7
    %v2019 = vsub.s32 0, %v2018
    %v2020 = vrot.slane %v2015, %v2019
    %v2021 = vlaneseq
    %v2022 = vshrl.u32 %v2021, 7
    %v2023 = vsub.s32 1, %v2022
    %v2024 = vrot.slane %v2015, %v2023
    %v2025 = vlaneseq
    %v2026 = vshrl.u32 %v2025, 7
    %v2027 = vsub.s32 2, %v2026
    %v2028 = vrot.slane %v2015, %v2027
    %v2029 = vlaneseq
    %v2030 = vshrl.u32 %v2029, 7
    %v2031 = vsub.s32 3, %v2030
    %v2032 = vrot.slane %v2015, %v2031
    %v2037 = vadd.f32 %v1927, %v2020
    %v2038 = vadd.f32 %v1929, %v2024
    %v2039 = vadd.f32 %v2009, %v2028
    %v2040 = vadd.f32 %v2011, %v2032
    %v2041 = vmax.f32 %v2037, 0.0
    %v2042 = vmax.f32 %v2038, 0.0
    %v2043 = vmax.f32 %v2039, 0.0
    %v2044 = vmax.f32 %v2040, 0.0
    %v2045 = vpack.c.bf16 %v2041, %v2041
    %v2046 = vpack.c.bf16 %v2042, %v2042
    %v2047 = vpack.c.bf16 %v2043, %v2043
    %v2048 = vpack.c.bf16 %v2044, %v2044
    %v2049 = vld [vmem:[#allocation8] sm:$0xff]
    %v2050 = vld [vmem:[#allocation8 + $0x8] sm:$0xff]
    %v2051 = vld [vmem:[#allocation8 + $0x10] sm:$0xff]
    %v2052 = vld [vmem:[#allocation8 + $0x18] sm:$0xff]
    %v2053 = vld [vmem:[#allocation8 + $0x20] sm:$0xff]
    %v2054 = vld [vmem:[#allocation8 + $0x28] sm:$0xff]
    %v2055 = vld [vmem:[#allocation8 + $0x30] sm:$0xff]
    %v2056 = vld [vmem:[#allocation8 + $0x38] sm:$0xff]
    %v2057 = vld [vmem:[#allocation8 + $0x40] sm:$0xff]
    %v2058 = vld [vmem:[#allocation8 + $0x48] sm:$0xff]
    %v2059 = vld [vmem:[#allocation8 + $0x50] sm:$0xff]
    %v2060 = vld [vmem:[#allocation8 + $0x58] sm:$0xff]
    %v2061 = vld [vmem:[#allocation8 + $0x60] sm:$0xff]
    %v2062 = vld [vmem:[#allocation8 + $0x68] sm:$0xff]
    %v2063 = vld [vmem:[#allocation8 + $0x70] sm:$0xff]
    %v2064 = vld [vmem:[#allocation8 + $0x78] sm:$0xff]
    %v2065 = vld [vmem:[#allocation8 + $0x80] sm:$0xff]
    %v2066 = vld [vmem:[#allocation8 + $0x88] sm:$0xff]
    %v2067 = vld [vmem:[#allocation8 + $0x90] sm:$0xff]
    %v2068 = vld [vmem:[#allocation8 + $0x98] sm:$0xff]
    %v2069 = vld [vmem:[#allocation8 + $0xa0] sm:$0xff]
    %v2070 = vld [vmem:[#allocation8 + $0xa8] sm:$0xff]
    %v2071 = vld [vmem:[#allocation8 + $0xb0] sm:$0xff]
    %v2072 = vld [vmem:[#allocation8 + $0xb8] sm:$0xff]
    %v2073 = vld [vmem:[#allocation8 + $0xc0] sm:$0xff]
    %v2074 = vld [vmem:[#allocation8 + $0xc8] sm:$0xff]
    %v2075 = vld [vmem:[#allocation8 + $0xd0] sm:$0xff]
    %v2076 = vld [vmem:[#allocation8 + $0xd8] sm:$0xff]
    %v2077 = vld [vmem:[#allocation8 + $0xe0] sm:$0xff]
    %v2078 = vld [vmem:[#allocation8 + $0xe8] sm:$0xff]
    %v2079 = vld [vmem:[#allocation8 + $0xf0] sm:$0xff]
    %v2080 = vld [vmem:[#allocation8 + $0xf8] sm:$0xff]
    %v2081 = vld [vmem:[#allocation8 + $0x100] sm:$0xff]
    %v2082 = vld [vmem:[#allocation8 + $0x108] sm:$0xff]
    %v2083 = vld [vmem:[#allocation8 + $0x110] sm:$0xff]
    %v2084 = vld [vmem:[#allocation8 + $0x118] sm:$0xff]
    %v2085 = vld [vmem:[#allocation8 + $0x120] sm:$0xff]
    %v2086 = vld [vmem:[#allocation8 + $0x128] sm:$0xff]
    %v2087 = vld [vmem:[#allocation8 + $0x130] sm:$0xff]
    %v2088 = vld [vmem:[#allocation8 + $0x138] sm:$0xff]
    %v2089 = vld [vmem:[#allocation8 + $0x140] sm:$0xff]
    %v2090 = vld [vmem:[#allocation8 + $0x148] sm:$0xff]
    %v2091 = vld [vmem:[#allocation8 + $0x150] sm:$0xff]
    %v2092 = vld [vmem:[#allocation8 + $0x158] sm:$0xff]
    %v2093 = vld [vmem:[#allocation8 + $0x160] sm:$0xff]
    %v2094 = vld [vmem:[#allocation8 + $0x168] sm:$0xff]
    %v2095 = vld [vmem:[#allocation8 + $0x170] sm:$0xff]
    %v2096 = vld [vmem:[#allocation8 + $0x178] sm:$0xff]
    %v2097 = vld [vmem:[#allocation8 + $0x180] sm:$0xff]
    %v2098 = vld [vmem:[#allocation8 + $0x188] sm:$0xff]
    %v2099 = vld [vmem:[#allocation8 + $0x190] sm:$0xff]
    %v2100 = vld [vmem:[#allocation8 + $0x198] sm:$0xff]
    %v2101 = vld [vmem:[#allocation8 + $0x1a0] sm:$0xff]
    %v2102 = vld [vmem:[#allocation8 + $0x1a8] sm:$0xff]
    %v2103 = vld [vmem:[#allocation8 + $0x1b0] sm:$0xff]
    %v2104 = vld [vmem:[#allocation8 + $0x1b8] sm:$0xff]
    %v2105 = vld [vmem:[#allocation8 + $0x1c0] sm:$0xff]
    %v2106 = vld [vmem:[#allocation8 + $0x1c8] sm:$0xff]
    %v2107 = vld [vmem:[#allocation8 + $0x1d0] sm:$0xff]
    %v2108 = vld [vmem:[#allocation8 + $0x1d8] sm:$0xff]
    %v2109 = vld [vmem:[#allocation8 + $0x1e0] sm:$0xff]
    %v2110 = vld [vmem:[#allocation8 + $0x1e8] sm:$0xff]
    %v2111 = vld [vmem:[#allocation8 + $0x1f0] sm:$0xff]
    %v2112 = vld [vmem:[#allocation8 + $0x1f8] sm:$0xff]
    %v2113 = vld [vmem:[#allocation8 + $0x200] sm:$0xff]
    %v2114 = vld [vmem:[#allocation8 + $0x208] sm:$0xff]
    %v2115 = vld [vmem:[#allocation8 + $0x210] sm:$0xff]
    %v2116 = vld [vmem:[#allocation8 + $0x218] sm:$0xff]
    %v2117 = vld [vmem:[#allocation8 + $0x220] sm:$0xff]
    %v2118 = vld [vmem:[#allocation8 + $0x228] sm:$0xff]
    %v2119 = vld [vmem:[#allocation8 + $0x230] sm:$0xff]
    %v2120 = vld [vmem:[#allocation8 + $0x238] sm:$0xff]
    %v2121 = vld [vmem:[#allocation8 + $0x240] sm:$0xff]
    %v2122 = vld [vmem:[#allocation8 + $0x248] sm:$0xff]
    %v2123 = vld [vmem:[#allocation8 + $0x250] sm:$0xff]
    %v2124 = vld [vmem:[#allocation8 + $0x258] sm:$0xff]
    %v2125 = vld [vmem:[#allocation8 + $0x260] sm:$0xff]
    %v2126 = vld [vmem:[#allocation8 + $0x268] sm:$0xff]
    %v2127 = vld [vmem:[#allocation8 + $0x270] sm:$0xff]
    %v2128 = vld [vmem:[#allocation8 + $0x278] sm:$0xff]
    %v2129 = vld [vmem:[#allocation8 + $0x280] sm:$0xff]
    %v2130 = vld [vmem:[#allocation8 + $0x288] sm:$0xff]
    %v2131 = vld [vmem:[#allocation8 + $0x290] sm:$0xff]
    %v2132 = vld [vmem:[#allocation8 + $0x298] sm:$0xff]
    %v2133 = vld [vmem:[#allocation8 + $0x2a0] sm:$0xff]
    %v2134 = vld [vmem:[#allocation8 + $0x2a8] sm:$0xff]
    %v2135 = vld [vmem:[#allocation8 + $0x2b0] sm:$0xff]
    %v2136 = vld [vmem:[#allocation8 + $0x2b8] sm:$0xff]
    %v2137 = vld [vmem:[#allocation8 + $0x2c0] sm:$0xff]
    %v2138 = vld [vmem:[#allocation8 + $0x2c8] sm:$0xff]
    %v2139 = vld [vmem:[#allocation8 + $0x2d0] sm:$0xff]
    %v2140 = vld [vmem:[#allocation8 + $0x2d8] sm:$0xff]
    %v2141 = vld [vmem:[#allocation8 + $0x2e0] sm:$0xff]
    %v2142 = vld [vmem:[#allocation8 + $0x2e8] sm:$0xff]
    %v2143 = vld [vmem:[#allocation8 + $0x2f0] sm:$0xff]
    %v2144 = vld [vmem:[#allocation8 + $0x2f8] sm:$0xff]
    %v2145 = vld [vmem:[#allocation8 + $0x300] sm:$0xff]
    %v2146 = vld [vmem:[#allocation8 + $0x308] sm:$0xff]
    %v2147 = vld [vmem:[#allocation8 + $0x310] sm:$0xff]
    %v2148 = vld [vmem:[#allocation8 + $0x318] sm:$0xff]
    %v2149 = vld [vmem:[#allocation8 + $0x320] sm:$0xff]
    %v2150 = vld [vmem:[#allocation8 + $0x328] sm:$0xff]
    %v2151 = vld [vmem:[#allocation8 + $0x330] sm:$0xff]
    %v2152 = vld [vmem:[#allocation8 + $0x338] sm:$0xff]
    %v2153 = vld [vmem:[#allocation8 + $0x340] sm:$0xff]
    %v2154 = vld [vmem:[#allocation8 + $0x348] sm:$0xff]
    %v2155 = vld [vmem:[#allocation8 + $0x350] sm:$0xff]
    %v2156 = vld [vmem:[#allocation8 + $0x358] sm:$0xff]
    %v2157 = vld [vmem:[#allocation8 + $0x360] sm:$0xff]
    %v2158 = vld [vmem:[#allocation8 + $0x368] sm:$0xff]
    %v2159 = vld [vmem:[#allocation8 + $0x370] sm:$0xff]
    %v2160 = vld [vmem:[#allocation8 + $0x378] sm:$0xff]
    %v2161 = vld [vmem:[#allocation8 + $0x380] sm:$0xff]
    %v2162 = vld [vmem:[#allocation8 + $0x388] sm:$0xff]
    %v2163 = vld [vmem:[#allocation8 + $0x390] sm:$0xff]
    %v2164 = vld [vmem:[#allocation8 + $0x398] sm:$0xff]
    %v2165 = vld [vmem:[#allocation8 + $0x3a0] sm:$0xff]
    %v2166 = vld [vmem:[#allocation8 + $0x3a8] sm:$0xff]
    %v2167 = vld [vmem:[#allocation8 + $0x3b0] sm:$0xff]
    %v2168 = vld [vmem:[#allocation8 + $0x3b8] sm:$0xff]
    %v2169 = vld [vmem:[#allocation8 + $0x3c0] sm:$0xff]
    %v2170 = vld [vmem:[#allocation8 + $0x3c8] sm:$0xff]
    %v2171 = vld [vmem:[#allocation8 + $0x3d0] sm:$0xff]
    %v2172 = vld [vmem:[#allocation8 + $0x3d8] sm:$0xff]
    %v2173 = vld [vmem:[#allocation8 + $0x3e0] sm:$0xff]
    %v2174 = vld [vmem:[#allocation8 + $0x3e8] sm:$0xff]
    %v2175 = vld [vmem:[#allocation8 + $0x3f0] sm:$0xff]
    %v2176 = vld [vmem:[#allocation8 + $0x3f8] sm:$0xff]
    %v2177 = vld [vmem:[%s5] sm:$0xf]
    %v2179 = vlaneseq
    %v2180 = vshrl.u32 %v2179, 7
    %v2181 = vsub.s32 0, %v2180
    %v2182 = vrot.slane %v2177, %v2181
    %v2183 = vlaneseq
    %v2184 = vshrl.u32 %v2183, 7
    %v2185 = vsub.s32 1, %v2184
    %v2186 = vrot.slane %v2177, %v2185
    %v2187 = vlaneseq
    %v2188 = vshrl.u32 %v2187, 7
    %v2189 = vsub.s32 2, %v2188
    %v2190 = vrot.slane %v2177, %v2189
    %v2191 = vlaneseq
    %v2192 = vshrl.u32 %v2191, 7
    %v2193 = vsub.s32 3, %v2192
    %v2194 = vrot.slane %v2177, %v2193
    %v2327 = vunpack.c.l.b16 %v2049
    %v2328 = vunpack.c.h.b16 %v2049
    %v2329 = vunpack.c.l.b16 %v2050
    %v2330 = vunpack.c.h.b16 %v2050
    %v2331 = vunpack.c.l.b16 %v2051
    %v2332 = vunpack.c.h.b16 %v2051
    %v2333 = vunpack.c.l.b16 %v2052
    %v2334 = vunpack.c.h.b16 %v2052
    %v2335 = vunpack.c.l.b16 %v2053
    %v2336 = vunpack.c.h.b16 %v2053
    %v2337 = vunpack.c.l.b16 %v2054
    %v2338 = vunpack.c.h.b16 %v2054
    %v2339 = vunpack.c.l.b16 %v2055
    %v2340 = vunpack.c.h.b16 %v2055
    %v2341 = vunpack.c.l.b16 %v2056
    %v2342 = vunpack.c.h.b16 %v2056
    %v2343 = vunpack.c.l.b16 %v2057
    %v2344 = vunpack.c.h.b16 %v2057
    %v2345 = vunpack.c.l.b16 %v2058
    %v2346 = vunpack.c.h.b16 %v2058
    %v2347 = vunpack.c.l.b16 %v2059
    %v2348 = vunpack.c.h.b16 %v2059
    %v2349 = vunpack.c.l.b16 %v2060
    %v2350 = vunpack.c.h.b16 %v2060
    %v2351 = vunpack.c.l.b16 %v2061
    %v2352 = vunpack.c.h.b16 %v2061
    %v2353 = vunpack.c.l.b16 %v2062
    %v2354 = vunpack.c.h.b16 %v2062
    %v2355 = vunpack.c.l.b16 %v2063
    %v2356 = vunpack.c.h.b16 %v2063
    %v2357 = vunpack.c.l.b16 %v2064
    %v2358 = vunpack.c.h.b16 %v2064
    %v2359 = vunpack.c.l.b16 %v2065
    %v2360 = vunpack.c.h.b16 %v2065
    %v2361 = vunpack.c.l.b16 %v2066
    %v2362 = vunpack.c.h.b16 %v2066
    %v2363 = vunpack.c.l.b16 %v2067
    %v2364 = vunpack.c.h.b16 %v2067
    %v2365 = vunpack.c.l.b16 %v2068
    %v2366 = vunpack.c.h.b16 %v2068
    %v2367 = vunpack.c.l.b16 %v2069
    %v2368 = vunpack.c.h.b16 %v2069
    %v2369 = vunpack.c.l.b16 %v2070
    %v2370 = vunpack.c.h.b16 %v2070
    %v2371 = vunpack.c.l.b16 %v2071
    %v2372 = vunpack.c.h.b16 %v2071
    %v2373 = vunpack.c.l.b16 %v2072
    %v2374 = vunpack.c.h.b16 %v2072
    %v2375 = vunpack.c.l.b16 %v2073
    %v2376 = vunpack.c.h.b16 %v2073
    %v2377 = vunpack.c.l.b16 %v2074
    %v2378 = vunpack.c.h.b16 %v2074
    %v2379 = vunpack.c.l.b16 %v2075
    %v2380 = vunpack.c.h.b16 %v2075
    %v2381 = vunpack.c.l.b16 %v2076
    %v2382 = vunpack.c.h.b16 %v2076
    %v2383 = vunpack.c.l.b16 %v2077
    %v2384 = vunpack.c.h.b16 %v2077
    %v2385 = vunpack.c.l.b16 %v2078
    %v2386 = vunpack.c.h.b16 %v2078
    %v2387 = vunpack.c.l.b16 %v2079
    %v2388 = vunpack.c.h.b16 %v2079
    %v2389 = vunpack.c.l.b16 %v2080
    %v2390 = vunpack.c.h.b16 %v2080
    %v2391 = vunpack.c.l.b16 %v2081
    %v2392 = vunpack.c.h.b16 %v2081
    %v2393 = vunpack.c.l.b16 %v2082
    %v2394 = vunpack.c.h.b16 %v2082
    %v2395 = vunpack.c.l.b16 %v2083
    %v2396 = vunpack.c.h.b16 %v2083
    %v2397 = vunpack.c.l.b16 %v2084
    %v2398 = vunpack.c.h.b16 %v2084
    %v2399 = vunpack.c.l.b16 %v2085
    %v2400 = vunpack.c.h.b16 %v2085
    %v2401 = vunpack.c.l.b16 %v2086
    %v2402 = vunpack.c.h.b16 %v2086
    %v2403 = vunpack.c.l.b16 %v2087
    %v2404 = vunpack.c.h.b16 %v2087
    %v2405 = vunpack.c.l.b16 %v2088
    %v2406 = vunpack.c.h.b16 %v2088
    %v2407 = vunpack.c.l.b16 %v2089
    %v2408 = vunpack.c.h.b16 %v2089
    %v2409 = vunpack.c.l.b16 %v2090
    %v2410 = vunpack.c.h.b16 %v2090
    %v2411 = vunpack.c.l.b16 %v2091
    %v2412 = vunpack.c.h.b16 %v2091
    %v2413 = vunpack.c.l.b16 %v2092
    %v2414 = vunpack.c.h.b16 %v2092
    %v2415 = vunpack.c.l.b16 %v2093
    %v2416 = vunpack.c.h.b16 %v2093
    %v2417 = vunpack.c.l.b16 %v2094
    %v2418 = vunpack.c.h.b16 %v2094
    %v2419 = vunpack.c.l.b16 %v2095
    %v2420 = vunpack.c.h.b16 %v2095
    %v2421 = vunpack.c.l.b16 %v2096
    %v2422 = vunpack.c.h.b16 %v2096
    %v2423 = vunpack.c.l.b16 %v2097
    %v2424 = vunpack.c.h.b16 %v2097
    %v2425 = vunpack.c.l.b16 %v2098
    %v2426 = vunpack.c.h.b16 %v2098
    %v2427 = vunpack.c.l.b16 %v2099
    %v2428 = vunpack.c.h.b16 %v2099
    %v2429 = vunpack.c.l.b16 %v2100
    %v2430 = vunpack.c.h.b16 %v2100
    %v2431 = vunpack.c.l.b16 %v2101
    %v2432 = vunpack.c.h.b16 %v2101
    %v2433 = vunpack.c.l.b16 %v2102
    %v2434 = vunpack.c.h.b16 %v2102
    %v2435 = vunpack.c.l.b16 %v2103
    %v2436 = vunpack.c.h.b16 %v2103
    %v2437 = vunpack.c.l.b16 %v2104
    %v2438 = vunpack.c.h.b16 %v2104
    %v2439 = vunpack.c.l.b16 %v2105
    %v2440 = vunpack.c.h.b16 %v2105
    %v2441 = vunpack.c.l.b16 %v2106
    %v2442 = vunpack.c.h.b16 %v2106
    %v2443 = vunpack.c.l.b16 %v2107
    %v2444 = vunpack.c.h.b16 %v2107
    %v2445 = vunpack.c.l.b16 %v2108
    %v2446 = vunpack.c.h.b16 %v2108
    %v2447 = vunpack.c.l.b16 %v2109
    %v2448 = vunpack.c.h.b16 %v2109
    %v2449 = vunpack.c.l.b16 %v2110
    %v2450 = vunpack.c.h.b16 %v2110
    %v2451 = vunpack.c.l.b16 %v2111
    %v2452 = vunpack.c.h.b16 %v2111
    %v2453 = vunpack.c.l.b16 %v2112
    %v2454 = vunpack.c.h.b16 %v2112
    %v2455 = vunpack.c.l.b16 %v2113
    %v2456 = vunpack.c.h.b16 %v2113
    %v2457 = vunpack.c.l.b16 %v2114
    %v2458 = vunpack.c.h.b16 %v2114
    %v2459 = vunpack.c.l.b16 %v2115
    %v2460 = vunpack.c.h.b16 %v2115
    %v2461 = vunpack.c.l.b16 %v2116
    %v2462 = vunpack.c.h.b16 %v2116
    %v2463 = vunpack.c.l.b16 %v2117
    %v2464 = vunpack.c.h.b16 %v2117
    %v2465 = vunpack.c.l.b16 %v2118
    %v2466 = vunpack.c.h.b16 %v2118
    %v2467 = vunpack.c.l.b16 %v2119
    %v2468 = vunpack.c.h.b16 %v2119
    %v2469 = vunpack.c.l.b16 %v2120
    %v2470 = vunpack.c.h.b16 %v2120
    %v2471 = vunpack.c.l.b16 %v2121
    %v2472 = vunpack.c.h.b16 %v2121
    %v2473 = vunpack.c.l.b16 %v2122
    %v2474 = vunpack.c.h.b16 %v2122
    %v2475 = vunpack.c.l.b16 %v2123
    %v2476 = vunpack.c.h.b16 %v2123
    %v2477 = vunpack.c.l.b16 %v2124
    %v2478 = vunpack.c.h.b16 %v2124
    %v2479 = vunpack.c.l.b16 %v2125
    %v2480 = vunpack.c.h.b16 %v2125
    %v2481 = vunpack.c.l.b16 %v2126
    %v2482 = vunpack.c.h.b16 %v2126
    %v2483 = vunpack.c.l.b16 %v2127
    %v2484 = vunpack.c.h.b16 %v2127
    %v2485 = vunpack.c.l.b16 %v2128
    %v2486 = vunpack.c.h.b16 %v2128
    %v2487 = vunpack.c.l.b16 %v2129
    %v2488 = vunpack.c.h.b16 %v2129
    %v2489 = vunpack.c.l.b16 %v2130
    %v2490 = vunpack.c.h.b16 %v2130
    %v2491 = vunpack.c.l.b16 %v2131
    %v2492 = vunpack.c.h.b16 %v2131
    %v2493 = vunpack.c.l.b16 %v2132
    %v2494 = vunpack.c.h.b16 %v2132
    %v2495 = vunpack.c.l.b16 %v2133
    %v2496 = vunpack.c.h.b16 %v2133
    %v2497 = vunpack.c.l.b16 %v2134
    %v2498 = vunpack.c.h.b16 %v2134
    %v2499 = vunpack.c.l.b16 %v2135
    %v2500 = vunpack.c.h.b16 %v2135
    %v2501 = vunpack.c.l.b16 %v2136
    %v2502 = vunpack.c.h.b16 %v2136
    %v2503 = vunpack.c.l.b16 %v2137
    %v2504 = vunpack.c.h.b16 %v2137
    %v2505 = vunpack.c.l.b16 %v2138
    %v2506 = vunpack.c.h.b16 %v2138
    %v2507 = vunpack.c.l.b16 %v2139
    %v2508 = vunpack.c.h.b16 %v2139
    %v2509 = vunpack.c.l.b16 %v2140
    %v2510 = vunpack.c.h.b16 %v2140
    %v2511 = vunpack.c.l.b16 %v2141
    %v2512 = vunpack.c.h.b16 %v2141
    %v2513 = vunpack.c.l.b16 %v2142
    %v2514 = vunpack.c.h.b16 %v2142
    %v2515 = vunpack.c.l.b16 %v2143
    %v2516 = vunpack.c.h.b16 %v2143
    %v2517 = vunpack.c.l.b16 %v2144
    %v2518 = vunpack.c.h.b16 %v2144
    %v2519 = vunpack.c.l.b16 %v2145
    %v2520 = vunpack.c.h.b16 %v2145
    %v2521 = vunpack.c.l.b16 %v2146
    %v2522 = vunpack.c.h.b16 %v2146
    %v2523 = vunpack.c.l.b16 %v2147
    %v2524 = vunpack.c.h.b16 %v2147
    %v2525 = vunpack.c.l.b16 %v2148
    %v2526 = vunpack.c.h.b16 %v2148
    %v2527 = vunpack.c.l.b16 %v2149
    %v2528 = vunpack.c.h.b16 %v2149
    %v2529 = vunpack.c.l.b16 %v2150
    %v2530 = vunpack.c.h.b16 %v2150
    %v2531 = vunpack.c.l.b16 %v2151
    %v2532 = vunpack.c.h.b16 %v2151
    %v2533 = vunpack.c.l.b16 %v2152
    %v2534 = vunpack.c.h.b16 %v2152
    %v2535 = vunpack.c.l.b16 %v2153
    %v2536 = vunpack.c.h.b16 %v2153
    %v2537 = vunpack.c.l.b16 %v2154
    %v2538 = vunpack.c.h.b16 %v2154
    %v2539 = vunpack.c.l.b16 %v2155
    %v2540 = vunpack.c.h.b16 %v2155
    %v2541 = vunpack.c.l.b16 %v2156
    %v2542 = vunpack.c.h.b16 %v2156
    %v2543 = vunpack.c.l.b16 %v2157
    %v2544 = vunpack.c.h.b16 %v2157
    %v2545 = vunpack.c.l.b16 %v2158
    %v2546 = vunpack.c.h.b16 %v2158
    %v2547 = vunpack.c.l.b16 %v2159
    %v2548 = vunpack.c.h.b16 %v2159
    %v2549 = vunpack.c.l.b16 %v2160
    %v2550 = vunpack.c.h.b16 %v2160
    %v2551 = vunpack.c.l.b16 %v2161
    %v2552 = vunpack.c.h.b16 %v2161
    %v2553 = vunpack.c.l.b16 %v2162
    %v2554 = vunpack.c.h.b16 %v2162
    %v2555 = vunpack.c.l.b16 %v2163
    %v2556 = vunpack.c.h.b16 %v2163
    %v2557 = vunpack.c.l.b16 %v2164
    %v2558 = vunpack.c.h.b16 %v2164
    %v2559 = vunpack.c.l.b16 %v2165
    %v2560 = vunpack.c.h.b16 %v2165
    %v2561 = vunpack.c.l.b16 %v2166
    %v2562 = vunpack.c.h.b16 %v2166
    %v2563 = vunpack.c.l.b16 %v2167
    %v2564 = vunpack.c.h.b16 %v2167
    %v2565 = vunpack.c.l.b16 %v2168
    %v2566 = vunpack.c.h.b16 %v2168
    %v2567 = vunpack.c.l.b16 %v2169
    %v2568 = vunpack.c.h.b16 %v2169
    %v2569 = vunpack.c.l.b16 %v2170
    %v2570 = vunpack.c.h.b16 %v2170
    %v2571 = vunpack.c.l.b16 %v2171
    %v2572 = vunpack.c.h.b16 %v2171
    %v2573 = vunpack.c.l.b16 %v2172
    %v2574 = vunpack.c.h.b16 %v2172
    %v2575 = vunpack.c.l.b16 %v2173
    %v2576 = vunpack.c.h.b16 %v2173
    %v2577 = vunpack.c.l.b16 %v2174
    %v2578 = vunpack.c.h.b16 %v2174
    %v2579 = vunpack.c.l.b16 %v2175
    %v2580 = vunpack.c.h.b16 %v2175
    %v2581 = vunpack.c.l.b16 %v2176
    %v2582 = vunpack.c.h.b16 %v2176
    %v2583 = vpack.c.b16 %v2331, %v2327
    %v2584 = vpack.c.b16 %v2332, %v2328
    %v2585 = vpack.c.b16 %v2333, %v2329
    %v2586 = vpack.c.b16 %v2334, %v2330
    %v2587 = vpack.c.b16 %v2339, %v2335
    %v2588 = vpack.c.b16 %v2340, %v2336
    %v2589 = vpack.c.b16 %v2341, %v2337
    %v2590 = vpack.c.b16 %v2342, %v2338
    %v2591 = vpack.c.b16 %v2347, %v2343
    %v2592 = vpack.c.b16 %v2348, %v2344
    %v2593 = vpack.c.b16 %v2349, %v2345
    %v2594 = vpack.c.b16 %v2350, %v2346
    %v2595 = vpack.c.b16 %v2355, %v2351
    %v2596 = vpack.c.b16 %v2356, %v2352
    %v2597 = vpack.c.b16 %v2357, %v2353
    %v2598 = vpack.c.b16 %v2358, %v2354
    %v2599 = vpack.c.b16 %v2363, %v2359
    %v2600 = vpack.c.b16 %v2364, %v2360
    %v2601 = vpack.c.b16 %v2365, %v2361
    %v2602 = vpack.c.b16 %v2366, %v2362
    %v2603 = vpack.c.b16 %v2371, %v2367
    %v2604 = vpack.c.b16 %v2372, %v2368
    %v2605 = vpack.c.b16 %v2373, %v2369
    %v2606 = vpack.c.b16 %v2374, %v2370
    %v2607 = vpack.c.b16 %v2379, %v2375
    %v2608 = vpack.c.b16 %v2380, %v2376
    %v2609 = vpack.c.b16 %v2381, %v2377
    %v2610 = vpack.c.b16 %v2382, %v2378
    %v2611 = vpack.c.b16 %v2387, %v2383
    %v2612 = vpack.c.b16 %v2388, %v2384
    %v2613 = vpack.c.b16 %v2389, %v2385
    %v2614 = vpack.c.b16 %v2390, %v2386
    %v2615 = vpack.c.b16 %v2395, %v2391
    %v2616 = vpack.c.b16 %v2396, %v2392
    %v2617 = vpack.c.b16 %v2397, %v2393
    %v2618 = vpack.c.b16 %v2398, %v2394
    %v2619 = vpack.c.b16 %v2403, %v2399
    %v2620 = vpack.c.b16 %v2404, %v2400
    %v2621 = vpack.c.b16 %v2405, %v2401
    %v2622 = vpack.c.b16 %v2406, %v2402
    %v2623 = vpack.c.b16 %v2411, %v2407
    %v2624 = vpack.c.b16 %v2412, %v2408
    %v2625 = vpack.c.b16 %v2413, %v2409
    %v2626 = vpack.c.b16 %v2414, %v2410
    %v2627 = vpack.c.b16 %v2419, %v2415
    %v2628 = vpack.c.b16 %v2420, %v2416
    %v2629 = vpack.c.b16 %v2421, %v2417
    %v2630 = vpack.c.b16 %v2422, %v2418
    %v2631 = vpack.c.b16 %v2427, %v2423
    %v2632 = vpack.c.b16 %v2428, %v2424
    %v2633 = vpack.c.b16 %v2429, %v2425
    %v2634 = vpack.c.b16 %v2430, %v2426
    %v2635 = vpack.c.b16 %v2435, %v2431
    %v2636 = vpack.c.b16 %v2436, %v2432
    %v2637 = vpack.c.b16 %v2437, %v2433
    %v2638 = vpack.c.b16 %v2438, %v2434
    %v2639 = vpack.c.b16 %v2443, %v2439
    %v2640 = vpack.c.b16 %v2444, %v2440
    %v2641 = vpack.c.b16 %v2445, %v2441
    %v2642 = vpack.c.b16 %v2446, %v2442
    %v2643 = vpack.c.b16 %v2451, %v2447
    %v2644 = vpack.c.b16 %v2452, %v2448
    %v2645 = vpack.c.b16 %v2453, %v2449
    %v2646 = vpack.c.b16 %v2454, %v2450
    %v2647 = vpack.c.b16 %v2459, %v2455
    %v2648 = vpack.c.b16 %v2460, %v2456
    %v2649 = vpack.c.b16 %v2461, %v2457
    %v2650 = vpack.c.b16 %v2462, %v2458
    %v2651 = vpack.c.b16 %v2467, %v2463
    %v2652 = vpack.c.b16 %v2468, %v2464
    %v2653 = vpack.c.b16 %v2469, %v2465
    %v2654 = vpack.c.b16 %v2470, %v2466
    %v2655 = vpack.c.b16 %v2475, %v2471
    %v2656 = vpack.c.b16 %v2476, %v2472
    %v2657 = vpack.c.b16 %v2477, %v2473
    %v2658 = vpack.c.b16 %v2478, %v2474
    %v2659 = vpack.c.b16 %v2483, %v2479
    %v2660 = vpack.c.b16 %v2484, %v2480
    %v2661 = vpack.c.b16 %v2485, %v2481
    %v2662 = vpack.c.b16 %v2486, %v2482
    %v2663 = vpack.c.b16 %v2491, %v2487
    %v2664 = vpack.c.b16 %v2492, %v2488
    %v2665 = vpack.c.b16 %v2493, %v2489
    %v2666 = vpack.c.b16 %v2494, %v2490
    %v2667 = vpack.c.b16 %v2499, %v2495
    %v2668 = vpack.c.b16 %v2500, %v2496
    %v2669 = vpack.c.b16 %v2501, %v2497
    %v2670 = vpack.c.b16 %v2502, %v2498
    %v2671 = vpack.c.b16 %v2507, %v2503
    %v2672 = vpack.c.b16 %v2508, %v2504
    %v2673 = vpack.c.b16 %v2509, %v2505
    %v2674 = vpack.c.b16 %v2510, %v2506
    %v2675 = vpack.c.b16 %v2515, %v2511
    %v2676 = vpack.c.b16 %v2516, %v2512
    %v2677 = vpack.c.b16 %v2517, %v2513
    %v2678 = vpack.c.b16 %v2518, %v2514
    %v2679 = vpack.c.b16 %v2523, %v2519
    %v2680 = vpack.c.b16 %v2524, %v2520
    %v2681 = vpack.c.b16 %v2525, %v2521
    %v2682 = vpack.c.b16 %v2526, %v2522
    %v2683 = vpack.c.b16 %v2531, %v2527
    %v2684 = vpack.c.b16 %v2532, %v2528
    %v2685 = vpack.c.b16 %v2533, %v2529
    %v2686 = vpack.c.b16 %v2534, %v2530
    %v2687 = vpack.c.b16 %v2539, %v2535
    %v2688 = vpack.c.b16 %v2540, %v2536
    %v2689 = vpack.c.b16 %v2541, %v2537
    %v2690 = vpack.c.b16 %v2542, %v2538
    %v2691 = vpack.c.b16 %v2547, %v2543
    %v2692 = vpack.c.b16 %v2548, %v2544
    %v2693 = vpack.c.b16 %v2549, %v2545
    %v2694 = vpack.c.b16 %v2550, %v2546
    %v2695 = vpack.c.b16 %v2555, %v2551
    %v2696 = vpack.c.b16 %v2556, %v2552
    %v2697 = vpack.c.b16 %v2557, %v2553
    %v2698 = vpack.c.b16 %v2558, %v2554
    %v2699 = vpack.c.b16 %v2563, %v2559
    %v2700 = vpack.c.b16 %v2564, %v2560
    %v2701 = vpack.c.b16 %v2565, %v2561
    %v2702 = vpack.c.b16 %v2566, %v2562
    %v2703 = vpack.c.b16 %v2571, %v2567
    %v2704 = vpack.c.b16 %v2572, %v2568
    %v2705 = vpack.c.b16 %v2573, %v2569
    %v2706 = vpack.c.b16 %v2574, %v2570
    %v2707 = vpack.c.b16 %v2579, %v2575
    %v2708 = vpack.c.b16 %v2580, %v2576
    %v2709 = vpack.c.b16 %v2581, %v2577
    %v2710 = vpack.c.b16 %v2582, %v2578
    %2839 = vmatprep.subr.bf16.mxu0 %v2584
    %2840 = vmatpush1.bf16.msra.mxu0 %v2583
    %2841 = vmatprep.subr.bf16.mxu0 %v2588
    %2842 = vmatpush1.bf16.msra.mxu0 %v2587
    %2843 = vmatprep.subr.bf16.mxu0 %v2592
    %2844 = vmatpush1.bf16.msra.mxu0 %v2591
    %2845 = vmatprep.subr.bf16.mxu0 %v2596
    %2846 = vmatpush1.bf16.msra.mxu0 %v2595
    %2847 = vmatprep.subr.bf16.mxu0 %v2600
    %2848 = vmatpush1.bf16.msra.mxu0 %v2599
    %2849 = vmatprep.subr.bf16.mxu0 %v2604
    %2850 = vmatpush1.bf16.msra.mxu0 %v2603
    %2851 = vmatprep.subr.bf16.mxu0 %v2608
    %2852 = vmatpush1.bf16.msra.mxu0 %v2607
    %2853 = vmatprep.subr.bf16.mxu0 %v2612
    %2854 = vmatpush1.bf16.msra.mxu0 %v2611
    %2855 = vmatprep.subr.bf16.mxu0 %v2616
    %2856 = vmatpush1.bf16.msra.mxu0 %v2615
    %2857 = vmatprep.subr.bf16.mxu0 %v2620
    %2858 = vmatpush1.bf16.msra.mxu0 %v2619
    %2859 = vmatprep.subr.bf16.mxu0 %v2624
    %2860 = vmatpush1.bf16.msra.mxu0 %v2623
    %2861 = vmatprep.subr.bf16.mxu0 %v2628
    %2862 = vmatpush1.bf16.msra.mxu0 %v2627
    %2863 = vmatprep.subr.bf16.mxu0 %v2632
    %2864 = vmatpush1.bf16.msra.mxu0 %v2631
    %2865 = vmatprep.subr.bf16.mxu0 %v2636
    %2866 = vmatpush1.bf16.msra.mxu0 %v2635
    %2867 = vmatprep.subr.bf16.mxu0 %v2640
    %2868 = vmatpush1.bf16.msra.mxu0 %v2639
    %2869 = vmatprep.subr.bf16.mxu0 %v2644
    %2870 = vmatpush1.bf16.msra.mxu0 %v2643
    %2871 = vmatprep.mubr.bf16.mxu0 %v2046
    %2872 = vmatmul.mubr.bf16.gmra.mrb[0].mxu0 %v2045
    %v2873 = vpop.f32.mrb[0].mxu0
    %v2874 = vadd.f32 %v2182, %v2873
    %v2875 = vpop.f32.mrb[0].mxu0
    %v2876 = vadd.f32 %v2186, %v2875
    %v2877 = vpop.f32.mrb[0].mxu0
    %v2878 = vpop.f32.mrb[0].mxu0
    %2879 = vdwg.mxu0
    %2880 = vmatprep.subr.bf16.mxu0 %v2648
    %2881 = vmatpush1.bf16.msra.mxu0 %v2647
    %2882 = vmatprep.subr.bf16.mxu0 %v2652
    %2883 = vmatpush1.bf16.msra.mxu0 %v2651
    %2884 = vmatprep.subr.bf16.mxu0 %v2656
    %2885 = vmatpush1.bf16.msra.mxu0 %v2655
    %2886 = vmatprep.subr.bf16.mxu0 %v2660
    %2887 = vmatpush1.bf16.msra.mxu0 %v2659
    %2888 = vmatprep.subr.bf16.mxu0 %v2664
    %2889 = vmatpush1.bf16.msra.mxu0 %v2663
    %2890 = vmatprep.subr.bf16.mxu0 %v2668
    %2891 = vmatpush1.bf16.msra.mxu0 %v2667
    %2892 = vmatprep.subr.bf16.mxu0 %v2672
    %2893 = vmatpush1.bf16.msra.mxu0 %v2671
    %2894 = vmatprep.subr.bf16.mxu0 %v2676
    %2895 = vmatpush1.bf16.msra.mxu0 %v2675
    %2896 = vmatprep.subr.bf16.mxu0 %v2680
    %2897 = vmatpush1.bf16.msra.mxu0 %v2679
    %2898 = vmatprep.subr.bf16.mxu0 %v2684
    %2899 = vmatpush1.bf16.msra.mxu0 %v2683
    %2900 = vmatprep.subr.bf16.mxu0 %v2688
    %2901 = vmatpush1.bf16.msra.mxu0 %v2687
    %2902 = vmatprep.subr.bf16.mxu0 %v2692
    %2903 = vmatpush1.bf16.msra.mxu0 %v2691
    %2904 = vmatprep.subr.bf16.mxu0 %v2696
    %2905 = vmatpush1.bf16.msra.mxu0 %v2695
    %2906 = vmatprep.subr.bf16.mxu0 %v2700
    %2907 = vmatpush1.bf16.msra.mxu0 %v2699
    %2908 = vmatprep.subr.bf16.mxu0 %v2704
    %2909 = vmatpush1.bf16.msra.mxu0 %v2703
    %2910 = vmatprep.subr.bf16.mxu0 %v2708
    %2911 = vmatpush1.bf16.msra.mxu0 %v2707
    %2912 = vmatprep.mubr.bf16.mxu0 %v2048
    %2913 = vmatmul.mubr.bf16.gmra.mrb[0].mxu0 %v2047
    %v2914 = vpop.f32.mrb[0].mxu0
    %v2915 = vadd.f32 %v2874, %v2914
    %v2916 = vpop.f32.mrb[0].mxu0
    %v2917 = vadd.f32 %v2876, %v2916
    %v2918 = vpop.f32.mrb[0].mxu0
    %v2919 = vpop.f32.mrb[0].mxu0
    %2920 = vdwg.mxu0
    %2921 = vmatprep.subr.bf16.mxu0 %v2586
    %2922 = vmatpush1.bf16.msra.mxu0 %v2585
    %2923 = vmatprep.subr.bf16.mxu0 %v2590
    %2924 = vmatpush1.bf16.msra.mxu0 %v2589
    %2925 = vmatprep.subr.bf16.mxu0 %v2594
    %2926 = vmatpush1.bf16.msra.mxu0 %v2593
    %2927 = vmatprep.subr.bf16.mxu0 %v2598
    %2928 = vmatpush1.bf16.msra.mxu0 %v2597
    %2929 = vmatprep.subr.bf16.mxu0 %v2602
    %2930 = vmatpush1.bf16.msra.mxu0 %v2601
    %2931 = vmatprep.subr.bf16.mxu0 %v2606
    %2932 = vmatpush1.bf16.msra.mxu0 %v2605
    %2933 = vmatprep.subr.bf16.mxu0 %v2610
    %2934 = vmatpush1.bf16.msra.mxu0 %v2609
    %2935 = vmatprep.subr.bf16.mxu0 %v2614
    %2936 = vmatpush1.bf16.msra.mxu0 %v2613
    %2937 = vmatprep.subr.bf16.mxu0 %v2618
    %2938 = vmatpush1.bf16.msra.mxu0 %v2617
    %2939 = vmatprep.subr.bf16.mxu0 %v2622
    %2940 = vmatpush1.bf16.msra.mxu0 %v2621
    %2941 = vmatprep.subr.bf16.mxu0 %v2626
    %2942 = vmatpush1.bf16.msra.mxu0 %v2625
    %2943 = vmatprep.subr.bf16.mxu0 %v2630
    %2944 = vmatpush1.bf16.msra.mxu0 %v2629
    %2945 = vmatprep.subr.bf16.mxu0 %v2634
    %2946 = vmatpush1.bf16.msra.mxu0 %v2633
    %2947 = vmatprep.subr.bf16.mxu0 %v2638
    %2948 = vmatpush1.bf16.msra.mxu0 %v2637
    %2949 = vmatprep.subr.bf16.mxu0 %v2642
    %2950 = vmatpush1.bf16.msra.mxu0 %v2641
    %2951 = vmatprep.subr.bf16.mxu0 %v2646
    %2952 = vmatpush1.bf16.msra.mxu0 %v2645
    %2953 = vmatprep.mubr.bf16.mxu0 %v2046
    %2954 = vmatmul.mubr.bf16.gmra.mrb[0].mxu0 %v2045
    %v2955 = vpop.f32.mrb[0].mxu0
    %v2956 = vadd.f32 %v2190, %v2955
    %v2957 = vpop.f32.mrb[0].mxu0
    %v2958 = vadd.f32 %v2194, %v2957
    %v2959 = vpop.f32.mrb[0].mxu0
    %v2960 = vpop.f32.mrb[0].mxu0
    %2961 = vdwg.mxu0
    %2962 = vmatprep.subr.bf16.mxu0 %v2650
    %2963 = vmatpush1.bf16.msra.mxu0 %v2649
    %2964 = vmatprep.subr.bf16.mxu0 %v2654
    %2965 = vmatpush1.bf16.msra.mxu0 %v2653
    %2966 = vmatprep.subr.bf16.mxu0 %v2658
    %2967 = vmatpush1.bf16.msra.mxu0 %v2657
    %2968 = vmatprep.subr.bf16.mxu0 %v2662
    %2969 = vmatpush1.bf16.msra.mxu0 %v2661
    %2970 = vmatprep.subr.bf16.mxu0 %v2666
    %2971 = vmatpush1.bf16.msra.mxu0 %v2665
    %2972 = vmatprep.subr.bf16.mxu0 %v2670
    %2973 = vmatpush1.bf16.msra.mxu0 %v2669
    %2974 = vmatprep.subr.bf16.mxu0 %v2674
    %2975 = vmatpush1.bf16.msra.mxu0 %v2673
    %2976 = vmatprep.subr.bf16.mxu0 %v2678
    %2977 = vmatpush1.bf16.msra.mxu0 %v2677
    %2978 = vmatprep.subr.bf16.mxu0 %v2682
    %2979 = vmatpush1.bf16.msra.mxu0 %v2681
    %2980 = vmatprep.subr.bf16.mxu0 %v2686
    %2981 = vmatpush1.bf16.msra.mxu0 %v2685
    %2982 = vmatprep.subr.bf16.mxu0 %v2690
    %2983 = vmatpush1.bf16.msra.mxu0 %v2689
    %2984 = vmatprep.subr.bf16.mxu0 %v2694
    %2985 = vmatpush1.bf16.msra.mxu0 %v2693
    %2986 = vmatprep.subr.bf16.mxu0 %v2698
    %2987 = vmatpush1.bf16.msra.mxu0 %v2697
    %2988 = vmatprep.subr.bf16.mxu0 %v2702
    %2989 = vmatpush1.bf16.msra.mxu0 %v2701
    %2990 = vmatprep.subr.bf16.mxu0 %v2706
    %2991 = vmatpush1.bf16.msra.mxu0 %v2705
    %2992 = vmatprep.subr.bf16.mxu0 %v2710
    %2993 = vmatpush1.bf16.msra.mxu0 %v2709
    %2994 = vmatprep.mubr.bf16.mxu0 %v2048
    %2995 = vmatmul.mubr.bf16.gmra.mrb[0].mxu0 %v2047
    %v2996 = vpop.f32.mrb[0].mxu0
    %v2997 = vadd.f32 %v2956, %v2996
    %v2998 = vpop.f32.mrb[0].mxu0
    %v2999 = vadd.f32 %v2958, %v2998
    %v3000 = vpop.f32.mrb[0].mxu0
    %v3001 = vpop.f32.mrb[0].mxu0
    %3002 = vdwg.mxu0
    %v3003 = vmax.f32 %v2915, 0.0
    %v3004 = vmax.f32 %v2917, 0.0
    %v3005 = vmax.f32 %v2997, 0.0
    %v3006 = vmax.f32 %v2999, 0.0
    %v3007 = vpack.c.bf16 %v3003, %v3003
    %v3008 = vpack.c.bf16 %v3004, %v3004
    %v3009 = vpack.c.bf16 %v3005, %v3005
    %v3010 = vpack.c.bf16 %v3006, %v3006
    %v3011 = vld [vmem:[#allocation10] sm:$0xf]
    %v3012 = vld [vmem:[#allocation10 + $0x4] sm:$0xf]
    %v3013 = vld [vmem:[#allocation10 + $0x8] sm:$0xf]
    %v3014 = vld [vmem:[#allocation10 + $0xc] sm:$0xf]
    %v3015 = vld [vmem:[#allocation10 + $0x10] sm:$0xf]
    %v3016 = vld [vmem:[#allocation10 + $0x14] sm:$0xf]
    %v3017 = vld [vmem:[#allocation10 + $0x18] sm:$0xf]
    %v3018 = vld [vmem:[#allocation10 + $0x1c] sm:$0xf]
    %v3019 = vld [vmem:[#allocation10 + $0x20] sm:$0xf]
    %v3020 = vld [vmem:[#allocation10 + $0x24] sm:$0xf]
    %v3021 = vld [vmem:[#allocation10 + $0x28] sm:$0xf]
    %v3022 = vld [vmem:[#allocation10 + $0x2c] sm:$0xf]
    %v3023 = vld [vmem:[#allocation10 + $0x30] sm:$0xf]
    %v3024 = vld [vmem:[#allocation10 + $0x34] sm:$0xf]
    %v3025 = vld [vmem:[#allocation10 + $0x38] sm:$0xf]
    %v3026 = vld [vmem:[#allocation10 + $0x3c] sm:$0xf]
    %v3027 = vld [vmem:[#allocation10 + $0x40] sm:$0xf]
    %v3028 = vld [vmem:[#allocation10 + $0x44] sm:$0xf]
    %v3029 = vld [vmem:[#allocation10 + $0x48] sm:$0xf]
    %v3030 = vld [vmem:[#allocation10 + $0x4c] sm:$0xf]
    %v3031 = vld [vmem:[#allocation10 + $0x50] sm:$0xf]
    %v3032 = vld [vmem:[#allocation10 + $0x54] sm:$0xf]
    %v3033 = vld [vmem:[#allocation10 + $0x58] sm:$0xf]
    %v3034 = vld [vmem:[#allocation10 + $0x5c] sm:$0xf]
    %v3035 = vld [vmem:[#allocation10 + $0x60] sm:$0xf]
    %v3036 = vld [vmem:[#allocation10 + $0x64] sm:$0xf]
    %v3037 = vld [vmem:[#allocation10 + $0x68] sm:$0xf]
    %v3038 = vld [vmem:[#allocation10 + $0x6c] sm:$0xf]
    %v3039 = vld [vmem:[#allocation10 + $0x70] sm:$0xf]
    %v3040 = vld [vmem:[#allocation10 + $0x74] sm:$0xf]
    %v3041 = vld [vmem:[#allocation10 + $0x78] sm:$0xf]
    %v3042 = vld [vmem:[#allocation10 + $0x7c] sm:$0xf]
    %v3043 = vld [vmem:[#allocation10 + $0x80] sm:$0xf]
    %v3044 = vld [vmem:[#allocation10 + $0x84] sm:$0xf]
    %v3045 = vld [vmem:[#allocation10 + $0x88] sm:$0xf]
    %v3046 = vld [vmem:[#allocation10 + $0x8c] sm:$0xf]
    %v3047 = vld [vmem:[#allocation10 + $0x90] sm:$0xf]
    %v3048 = vld [vmem:[#allocation10 + $0x94] sm:$0xf]
    %v3049 = vld [vmem:[#allocation10 + $0x98] sm:$0xf]
    %v3050 = vld [vmem:[#allocation10 + $0x9c] sm:$0xf]
    %v3051 = vld [vmem:[#allocation10 + $0xa0] sm:$0xf]
    %v3052 = vld [vmem:[#allocation10 + $0xa4] sm:$0xf]
    %v3053 = vld [vmem:[#allocation10 + $0xa8] sm:$0xf]
    %v3054 = vld [vmem:[#allocation10 + $0xac] sm:$0xf]
    %v3055 = vld [vmem:[#allocation10 + $0xb0] sm:$0xf]
    %v3056 = vld [vmem:[#allocation10 + $0xb4] sm:$0xf]
    %v3057 = vld [vmem:[#allocation10 + $0xb8] sm:$0xf]
    %v3058 = vld [vmem:[#allocation10 + $0xbc] sm:$0xf]
    %v3059 = vld [vmem:[#allocation10 + $0xc0] sm:$0xf]
    %v3060 = vld [vmem:[#allocation10 + $0xc4] sm:$0xf]
    %v3061 = vld [vmem:[#allocation10 + $0xc8] sm:$0xf]
    %v3062 = vld [vmem:[#allocation10 + $0xcc] sm:$0xf]
    %v3063 = vld [vmem:[#allocation10 + $0xd0] sm:$0xf]
    %v3064 = vld [vmem:[#allocation10 + $0xd4] sm:$0xf]
    %v3065 = vld [vmem:[#allocation10 + $0xd8] sm:$0xf]
    %v3066 = vld [vmem:[#allocation10 + $0xdc] sm:$0xf]
    %v3067 = vld [vmem:[#allocation10 + $0xe0] sm:$0xf]
    %v3068 = vld [vmem:[#allocation10 + $0xe4] sm:$0xf]
    %v3069 = vld [vmem:[#allocation10 + $0xe8] sm:$0xf]
    %v3070 = vld [vmem:[#allocation10 + $0xec] sm:$0xf]
    %v3071 = vld [vmem:[#allocation10 + $0xf0] sm:$0xf]
    %v3072 = vld [vmem:[#allocation10 + $0xf4] sm:$0xf]
    %v3073 = vld [vmem:[#allocation10 + $0xf8] sm:$0xf]
    %v3074 = vld [vmem:[#allocation10 + $0xfc] sm:$0xf]
    %v3075 = vld [vmem:[%s7] sm:$0x1]
    %v3077 = vlaneseq
    %v3078 = vshrl.u32 %v3077, 7
    %v3079 = vsub.s32 0, %v3078
    %v3080 = vrot.slane %v3075, %v3079
    %v3146 = vunpack.c.l.b16 %v3011
    %v3147 = vunpack.c.l.b16 %v3012
    %v3148 = vunpack.c.l.b16 %v3013
    %v3149 = vunpack.c.l.b16 %v3014
    %v3150 = vunpack.c.l.b16 %v3015
    %v3151 = vunpack.c.l.b16 %v3016
    %v3152 = vunpack.c.l.b16 %v3017
    %v3153 = vunpack.c.l.b16 %v3018
    %v3154 = vunpack.c.l.b16 %v3019
    %v3155 = vunpack.c.l.b16 %v3020
    %v3156 = vunpack.c.l.b16 %v3021
    %v3157 = vunpack.c.l.b16 %v3022
    %v3158 = vunpack.c.l.b16 %v3023
    %v3159 = vunpack.c.l.b16 %v3024
    %v3160 = vunpack.c.l.b16 %v3025
    %v3161 = vunpack.c.l.b16 %v3026
    %v3162 = vunpack.c.l.b16 %v3027
    %v3163 = vunpack.c.l.b16 %v3028
    %v3164 = vunpack.c.l.b16 %v3029
    %v3165 = vunpack.c.l.b16 %v3030
    %v3166 = vunpack.c.l.b16 %v3031
    %v3167 = vunpack.c.l.b16 %v3032
    %v3168 = vunpack.c.l.b16 %v3033
    %v3169 = vunpack.c.l.b16 %v3034
    %v3170 = vunpack.c.l.b16 %v3035
    %v3171 = vunpack.c.l.b16 %v3036
    %v3172 = vunpack.c.l.b16 %v3037
    %v3173 = vunpack.c.l.b16 %v3038
    %v3174 = vunpack.c.l.b16 %v3039
    %v3175 = vunpack.c.l.b16 %v3040
    %v3176 = vunpack.c.l.b16 %v3041
    %v3177 = vunpack.c.l.b16 %v3042
    %v3178 = vunpack.c.l.b16 %v3043
    %v3179 = vunpack.c.l.b16 %v3044
    %v3180 = vunpack.c.l.b16 %v3045
    %v3181 = vunpack.c.l.b16 %v3046
    %v3182 = vunpack.c.l.b16 %v3047
    %v3183 = vunpack.c.l.b16 %v3048
    %v3184 = vunpack.c.l.b16 %v3049
    %v3185 = vunpack.c.l.b16 %v3050
    %v3186 = vunpack.c.l.b16 %v3051
    %v3187 = vunpack.c.l.b16 %v3052
    %v3188 = vunpack.c.l.b16 %v3053
    %v3189 = vunpack.c.l.b16 %v3054
    %v3190 = vunpack.c.l.b16 %v3055
    %v3191 = vunpack.c.l.b16 %v3056
    %v3192 = vunpack.c.l.b16 %v3057
    %v3193 = vunpack.c.l.b16 %v3058
    %v3194 = vunpack.c.l.b16 %v3059
    %v3195 = vunpack.c.l.b16 %v3060
    %v3196 = vunpack.c.l.b16 %v3061
    %v3197 = vunpack.c.l.b16 %v3062
    %v3198 = vunpack.c.l.b16 %v3063
    %v3199 = vunpack.c.l.b16 %v3064
    %v3200 = vunpack.c.l.b16 %v3065
    %v3201 = vunpack.c.l.b16 %v3066
    %v3202 = vunpack.c.l.b16 %v3067
    %v3203 = vunpack.c.l.b16 %v3068
    %v3204 = vunpack.c.l.b16 %v3069
    %v3205 = vunpack.c.l.b16 %v3070
    %v3206 = vunpack.c.l.b16 %v3071
    %v3207 = vunpack.c.l.b16 %v3072
    %v3208 = vunpack.c.l.b16 %v3073
    %v3209 = vunpack.c.l.b16 %v3074
    %v3210 = vpack.c.b16 %v3147, %v3146
    %v3211 = vpack.c.b16 %v3149, %v3148
    %v3212 = vpack.c.b16 %v3151, %v3150
    %v3213 = vpack.c.b16 %v3153, %v3152
    %v3214 = vpack.c.b16 %v3155, %v3154
    %v3215 = vpack.c.b16 %v3157, %v3156
    %v3216 = vpack.c.b16 %v3159, %v3158
    %v3217 = vpack.c.b16 %v3161, %v3160
    %v3218 = vpack.c.b16 %v3163, %v3162
    %v3219 = vpack.c.b16 %v3165, %v3164
    %v3220 = vpack.c.b16 %v3167, %v3166
    %v3221 = vpack.c.b16 %v3169, %v3168
    %v3222 = vpack.c.b16 %v3171, %v3170
    %v3223 = vpack.c.b16 %v3173, %v3172
    %v3224 = vpack.c.b16 %v3175, %v3174
    %v3225 = vpack.c.b16 %v3177, %v3176
    %v3226 = vpack.c.b16 %v3179, %v3178
    %v3227 = vpack.c.b16 %v3181, %v3180
    %v3228 = vpack.c.b16 %v3183, %v3182
    %v3229 = vpack.c.b16 %v3185, %v3184
    %v3230 = vpack.c.b16 %v3187, %v3186
    %v3231 = vpack.c.b16 %v3189, %v3188
    %v3232 = vpack.c.b16 %v3191, %v3190
    %v3233 = vpack.c.b16 %v3193, %v3192
    %v3234 = vpack.c.b16 %v3195, %v3194
    %v3235 = vpack.c.b16 %v3197, %v3196
    %v3236 = vpack.c.b16 %v3199, %v3198
    %v3237 = vpack.c.b16 %v3201, %v3200
    %v3238 = vpack.c.b16 %v3203, %v3202
    %v3239 = vpack.c.b16 %v3205, %v3204
    %v3240 = vpack.c.b16 %v3207, %v3206
    %v3241 = vpack.c.b16 %v3209, %v3208
    %3274 = vmatprep.subr.bf16.mxu0 0
    %3275 = vmatpush1.bf16.msra.mxu0 %v3210
    %3276 = vmatprep.subr.bf16.mxu0 0
    %3277 = vmatpush1.bf16.msra.mxu0 %v3211
    %3278 = vmatprep.subr.bf16.mxu0 0
    %3279 = vmatpush1.bf16.msra.mxu0 %v3212
    %3280 = vmatprep.subr.bf16.mxu0 0
    %3281 = vmatpush1.bf16.msra.mxu0 %v3213
    %3282 = vmatprep.subr.bf16.mxu0 0
    %3283 = vmatpush1.bf16.msra.mxu0 %v3214
    %3284 = vmatprep.subr.bf16.mxu0 0
    %3285 = vmatpush1.bf16.msra.mxu0 %v3215
    %3286 = vmatprep.subr.bf16.mxu0 0
    %3287 = vmatpush1.bf16.msra.mxu0 %v3216
    %3288 = vmatprep.subr.bf16.mxu0 0
    %3289 = vmatpush1.bf16.msra.mxu0 %v3217
    %3290 = vmatprep.subr.bf16.mxu0 0
    %3291 = vmatpush1.bf16.msra.mxu0 %v3218
    %3292 = vmatprep.subr.bf16.mxu0 0
    %3293 = vmatpush1.bf16.msra.mxu0 %v3219
    %3294 = vmatprep.subr.bf16.mxu0 0
    %3295 = vmatpush1.bf16.msra.mxu0 %v3220
    %3296 = vmatprep.subr.bf16.mxu0 0
    %3297 = vmatpush1.bf16.msra.mxu0 %v3221
    %3298 = vmatprep.subr.bf16.mxu0 0
    %3299 = vmatpush1.bf16.msra.mxu0 %v3222
    %3300 = vmatprep.subr.bf16.mxu0 0
    %3301 = vmatpush1.bf16.msra.mxu0 %v3223
    %3302 = vmatprep.subr.bf16.mxu0 0
    %3303 = vmatpush1.bf16.msra.mxu0 %v3224
    %3304 = vmatprep.subr.bf16.mxu0 0
    %3305 = vmatpush1.bf16.msra.mxu0 %v3225
    %3306 = vmatprep.mubr.bf16.mxu0 %v3008
    %3307 = vmatmul.mubr.bf16.gmra.mrb[0].mxu0 %v3007
    %v3308 = vpop.f32.mrb[0].mxu0
    %v3309 = vadd.f32 %v3080, %v3308
    %v3310 = vpop.f32.mrb[0].mxu0
    %v3311 = vpop.f32.mrb[0].mxu0
    %v3312 = vpop.f32.mrb[0].mxu0
    %3313 = vdwg.mxu0
    %3314 = vmatprep.subr.bf16.mxu0 0
    %3315 = vmatpush1.bf16.msra.mxu0 %v3226
    %3316 = vmatprep.subr.bf16.mxu0 0
    %3317 = vmatpush1.bf16.msra.mxu0 %v3227
    %3318 = vmatprep.subr.bf16.mxu0 0
    %3319 = vmatpush1.bf16.msra.mxu0 %v3228
    %3320 = vmatprep.subr.bf16.mxu0 0
    %3321 = vmatpush1.bf16.msra.mxu0 %v3229
    %3322 = vmatprep.subr.bf16.mxu0 0
    %3323 = vmatpush1.bf16.msra.mxu0 %v3230
    %3324 = vmatprep.subr.bf16.mxu0 0
    %3325 = vmatpush1.bf16.msra.mxu0 %v3231
    %3326 = vmatprep.subr.bf16.mxu0 0
    %3327 = vmatpush1.bf16.msra.mxu0 %v3232
    %3328 = vmatprep.subr.bf16.mxu0 0
    %3329 = vmatpush1.bf16.msra.mxu0 %v3233
    %3330 = vmatprep.subr.bf16.mxu0 0
    %3331 = vmatpush1.bf16.msra.mxu0 %v3234
    %3332 = vmatprep.subr.bf16.mxu0 0
    %3333 = vmatpush1.bf16.msra.mxu0 %v3235
    %3334 = vmatprep.subr.bf16.mxu0 0
    %3335 = vmatpush1.bf16.msra.mxu0 %v3236
    %3336 = vmatprep.subr.bf16.mxu0 0
    %3337 = vmatpush1.bf16.msra.mxu0 %v3237
    %3338 = vmatprep.subr.bf16.mxu0 0
    %3339 = vmatpush1.bf16.msra.mxu0 %v3238
    %3340 = vmatprep.subr.bf16.mxu0 0
    %3341 = vmatpush1.bf16.msra.mxu0 %v3239
    %3342 = vmatprep.subr.bf16.mxu0 0
    %3343 = vmatpush1.bf16.msra.mxu0 %v3240
    %3344 = vmatprep.subr.bf16.mxu0 0
    %3345 = vmatpush1.bf16.msra.mxu0 %v3241
    %3346 = vmatprep.mubr.bf16.mxu0 %v3010
    %3347 = vmatmul.mubr.bf16.gmra.mrb[0].mxu0 %v3009
    %v3348 = vpop.f32.mrb[0].mxu0
    %v3349 = vadd.f32 %v3309, %v3348
    %v3350 = vpop.f32.mrb[0].mxu0
    %v3351 = vpop.f32.mrb[0].mxu0
    %v3352 = vpop.f32.mrb[0].mxu0
    %3353 = vdwg.mxu0
    %v3354 = vpack.c.bf16 %v3349, %v3349
    %3355 = vst [vmem:[#allocation11] sm:$0x1] %v3354
    // Predicated region
    $region54: #{tpu_custom_call.1} parent=1 // pred_check
      _
    $region55: #{tpu_custom_call.1} parent=1 // pred_check_branch
      %3357 = sbr.rel (0) target = $region57
    $region56: #{tpu_custom_call.1} parent=1 // pred_region
      %s3359 = ssub.s32 16, 16
      %3360 = vsyncadd [#allocation4], %s3359
      %s3362 = sshll.u32 [#allocation11], 4
      %s3363 = int_to_ptr.vmem [resolvable:$true] %s3362
      %3365 = dma.vmem_to_hbm [thread:$0]  %s3363, 16, %s8, [#allocation4]
    $region57: #{tpu_custom_call.1} parent=1 // pred_fallthru
      _
    // Predicated region
    $region58: #{tpu_custom_call.1} parent=1 // pred_check
      _
    $region59: #{tpu_custom_call.1} parent=1 // pred_check_branch
      %3367 = sbr.rel (0) target = $region61
    $region60: #{tpu_custom_call.1} parent=1 // pred_region
      %3368 = dma.done [#allocation4], 16
    $region61: #{tpu_custom_call.1} parent=1 // pred_fallthru
      _
    %3369 = vsyncpa [#allocation3], 1
    %3370 = vsyncpa [#allocation6], 1
    %3371 = vsyncpa [#allocation9], 1
    %3372 = vsyncpa [#allocation4], 1

</llo_original>
